<compile_context>
chip_gen: v5e
topology: v5e:2x2
jax: 0.10.0
libtpu: 0.0.40
codegen_flags: <defaults>
</compile_context>

<pallas_src>
import math

import jax
import jax.numpy as jnp
from jax import lax
from jax.experimental import pallas as pl
from jax.experimental.pallas import tpu as pltpu


# ---------------------------------------------------------------------------
# helpers
# ---------------------------------------------------------------------------
def _resident_spec(shape):
    """Whole-array block that stays VMEM-resident across the iteration grid."""
    n = len(shape)
    return pl.BlockSpec(shape, lambda i, n=n: (0,) * n)


def _masked_softmax(scores, add_mask):
    scores = scores + add_mask
    m = jnp.max(scores, axis=-1, keepdims=True)
    p = jnp.exp(scores - m)
    denom = jnp.sum(p, axis=-1, keepdims=True)
    return p * pl.reciprocal(denom, approx=True)


# ---------------------------------------------------------------------------
# fused decoder-layer kernel
# ---------------------------------------------------------------------------
def _make_decoder_kernel(num_iterations, iteration_type, D, HW):
    inv_sqrt_d = 1.0 / math.sqrt(D)
    hw_f = float(HW)

    def kernel(feats_ref, featpos_ref, caddmask_ref, selmask_ref, fold_ref,
               wq_c_ref, wk_c_ref, wv_c_ref, wo_c_ref,
               saddmask_ref, wqkv_s_ref, wo_s_ref,
               w1_ref, b1_ref, w2_ref, b2_ref,
               slots0_ref, seg0_ref, curio0_ref,
               slots_out, seg_out, curio_out, loss_out,
               k_scr, v_scr, slots_scr, seg_scr, curio_scr, loss_scr):
        it = pl.program_id(0)
        last = num_iterations - 1
        N = slots0_ref.shape[0]
        loss_norm = 1.0 / (N * HW)

        @pl.when(it == 0)
        def _init():
            # Loop-invariant K / V projections of the (pos-enriched) feature map.
            k_scr[...] = jnp.dot(featpos_ref[...], wk_c_ref[...],
                                 preferred_element_type=jnp.float32)
            v_scr[...] = jnp.dot(feats_ref[...], wv_c_ref[...],
                                 preferred_element_type=jnp.float32)
            # Loop-carried state lives in VMEM scratch across the grid.
            slots_scr[...] = slots0_ref[...]
            seg_scr[...] = seg0_ref[...]
            curio_scr[...] = curio0_ref[...]
            loss_scr[...] = jnp.zeros_like(loss_scr)

        slots = slots_scr[...]          # [N, D]
        seg = seg_scr[...]              # [N, HWp]
        curio = curio_scr[...]          # [N, HWp]

        # ------------------------- cross-attention --------------------------
        q = jnp.dot(slots, wq_c_ref[...],
                    preferred_element_type=jnp.float32) * inv_sqrt_d          # [N, D]
        scores = lax.dot_general(q, k_scr[...],
                                 dimension_numbers=(((1,), (1,)), ((), ())),
                                 preferred_element_type=jnp.float32)          # [N, B*HW]
        attn = _masked_softmax(scores, caddmask_ref[...])

        upd = jnp.dot(attn, v_scr[...], preferred_element_type=jnp.float32)   # [N, D]
        slots = slots + jnp.dot(upd, wo_c_ref[...],
                                preferred_element_type=jnp.float32)

        # Per-slot affinity over its own batch's feature map, via an MXU "fold"
        # matmul (no in-kernel reshape / cross-batch reduce).
        aff = jnp.dot(attn * selmask_ref[...], fold_ref[...],
                      preferred_element_type=jnp.float32)                     # [N, HWp]
        seg = seg + aff

        curio_target = aff * hw_f
        diff = curio_target - curio
        per_slot = jnp.sum(diff * diff, axis=1, keepdims=True)                # [N, 1]
        step_loss = jnp.sum(per_slot, axis=0, keepdims=True) * loss_norm      # [1, 1]
        loss_scr[...] = loss_scr[...] + step_loss
        curio = 0.9 * curio + 0.1 * curio_target

        seg_scr[...] = seg
        curio_scr[...] = curio

        # ---------------------- self-attention + FFN ------------------------
        def self_and_ffn(s):
            qkv = jnp.dot(s, wqkv_s_ref[...],
                          preferred_element_type=jnp.float32)                 # [N, 3D]
            qs = qkv[:, :D] * inv_sqrt_d
            ks = qkv[:, D:2 * D]
            vs = qkv[:, 2 * D:]
            sc = lax.dot_general(qs, ks,
                                 dimension_numbers=(((1,), (1,)), ((), ())),
                                 preferred_element_type=jnp.float32)          # [N, N]
            a = _masked_softmax(sc, saddmask_ref[...])
            o = jnp.dot(a, vs, preferred_element_type=jnp.float32)
            s = s + jnp.dot(o, wo_s_ref[...], preferred_element_type=jnp.float32)
            # FFN (residual MLP)
            h = jnp.dot(s, w1_ref[...], preferred_element_type=jnp.float32) + b1_ref[...]
            h = jnp.maximum(h, 0.0)
            return s + jnp.dot(h, w2_ref[...],
                               preferred_element_type=jnp.float32) + b2_ref[...]

        if iteration_type == 'outside':
            slots_scr[...] = self_and_ffn(slots)
        else:  # 'inside': self-attention + FFN only once, after the last cross-attn
            slots_scr[...] = slots

            @pl.when(it == last)
            def _tail():
                slots_scr[...] = self_and_ffn(slots_scr[...])

        @pl.when(it == last)
        def _finalize():
            slots_out[...] = slots_scr[...]
            seg_out[...] = seg_scr[...]
            curio_out[...] = curio_scr[...]
            loss_out[...] = loss_scr[...] * (1.0 / num_iterations)

    return kernel


def _fused_decoder_call(feats, featpos, cadd_mask, sel_mask, fold,
                        wq_c, wk_c, wv_c, wo_c,
                        sadd_mask, wqkv_s, wo_s,
                        w1, b1, w2, b2,
                        slots0, seg0, curio0,
                        HW, num_iterations, iteration_type):
    N, D = slots0.shape
    HWp = seg0.shape[1]
    BHW = feats.shape[0]

    ins = (feats, featpos, cadd_mask, sel_mask, fold,
           wq_c, wk_c, wv_c, wo_c,
           sadd_mask, wqkv_s, wo_s,
           w1, b1, w2, b2,
           slots0, seg0, curio0)

    out_shapes = (
        jax.ShapeDtypeStruct((N, D), jnp.float32),    # slots
        jax.ShapeDtypeStruct((N, HWp), jnp.float32),  # seg (lane-padded)
        jax.ShapeDtypeStruct((N, HWp), jnp.float32),  # curio (lane-padded)
        jax.ShapeDtypeStruct((1, 1), jnp.float32),    # curio loss
    )

    kernel = _make_decoder_kernel(num_iterations, iteration_type, D, HW)

    grid_spec = pltpu.PrefetchScalarGridSpec(
        num_scalar_prefetch=0,
        grid=(num_iterations,),
        in_specs=[_resident_spec(a.shape) for a in ins],
        out_specs=tuple(_resident_spec(s.shape) for s in out_shapes),
        scratch_shapes=[
            pltpu.VMEM((BHW, D), jnp.float32),   # K (loop-invariant)
            pltpu.VMEM((BHW, D), jnp.float32),   # V (loop-invariant)
            pltpu.VMEM((N, D), jnp.float32),     # slots carry
            pltpu.VMEM((N, HWp), jnp.float32),   # seg carry
            pltpu.VMEM((N, HWp), jnp.float32),   # curio carry
            pltpu.VMEM((1, 1), jnp.float32),     # loss accumulator
        ],
    )

    return pl.pallas_call(
        kernel,
        out_shape=out_shapes,
        grid_spec=grid_spec,
        compiler_params=pltpu.CompilerParams(
            dimension_semantics=("arbitrary",)),
    )(*ins)


# ---------------------------------------------------------------------------
# Synthetic sub-modules (deterministic parameter containers)
# ---------------------------------------------------------------------------
class CrossAttention:
    def __init__(self, feat_dim, key):
        k1, k2, k3, k4 = jax.random.split(key, 4)
        s = 0.05
        self.wq = s * jax.random.normal(k1, (feat_dim, feat_dim), jnp.float32)
        self.wk = s * jax.random.normal(k2, (feat_dim, feat_dim), jnp.float32)
        self.wv = s * jax.random.normal(k3, (feat_dim, feat_dim), jnp.float32)
        self.wo = s * jax.random.normal(k4, (feat_dim, feat_dim), jnp.float32)


class SelfAttention:
    def __init__(self, feat_dim, key):
        k1, k2, k3, k4 = jax.random.split(key, 4)
        s = 0.05
        self.wq = s * jax.random.normal(k1, (feat_dim, feat_dim), jnp.float32)
        self.wk = s * jax.random.normal(k2, (feat_dim, feat_dim), jnp.float32)
        self.wv = s * jax.random.normal(k3, (feat_dim, feat_dim), jnp.float32)
        self.wo = s * jax.random.normal(k4, (feat_dim, feat_dim), jnp.float32)


class FFN:
    def __init__(self, feat_dim, hidden_dim, key):
        k1, k2 = jax.random.split(key, 2)
        s = 0.05
        self.w1 = s * jax.random.normal(k1, (feat_dim, hidden_dim), jnp.float32)
        self.b1 = jnp.zeros((1, hidden_dim), jnp.float32)
        self.w2 = s * jax.random.normal(k2, (hidden_dim, feat_dim), jnp.float32)
        self.b2 = jnp.zeros((1, feat_dim), jnp.float32)


# ---------------------------------------------------------------------------
# SampleDecoderLayer (same control flow / returns as the PyTorch module,
# but the iteration loop is executed inside one fused Pallas kernel)
# ---------------------------------------------------------------------------
class SampleDecoderLayer:
    def __init__(self, cross_attention, self_attention, ffn, iter_dict):
        self.cross_attention = cross_attention
        self.self_attention = self_attention
        self.ffn = ffn
        self.num_iterations = iter_dict['num_iterations']
        self.iteration_type = iter_dict['type']

    def __call__(self, features, pos, slots, batch_ids, seg_maps, curio_maps,
                 max_mask_entries, shared_items):
        # Kept for signature parity with the reference module.
        cross_shared_items = {k: v for k, v in shared_items.items() if 'cross' in k}
        self_shared_items = {k: v for k, v in shared_items.items() if 'self' in k}
        del cross_shared_items, self_shared_items
        # TODO(synk): max_mask_entries / shared_items are accepted for signature
        # parity but unused by these synthetic cross/self-attention sub-modules.

        HW, B, D = features.shape
        N = slots.shape[1]
        fH, fW = seg_maps.shape[1], seg_maps.shape[2]
        HWp = ((HW + 127) // 128) * 128     # lane-dense width for seg / curio / affinity

        # ----- loop-invariant prep, hoisted out of the iteration loop -----
        feats_b = jnp.transpose(features, (1, 0, 2)).reshape(B * HW, D)
        featpos_b = jnp.transpose(features + pos, (1, 0, 2)).reshape(B * HW, D)

        bmask = (batch_ids[:, None] ==
                 jnp.arange(B, dtype=batch_ids.dtype)[None, :]).astype(jnp.float32)  # [N, B]
        sel_mask = jnp.repeat(bmask, HW, axis=1)              # [N, B*HW]  own-batch columns
        cadd_mask = (sel_mask - 1.0) * 1e9                    # additive cross-attn mask
        smask = (batch_ids[:, None] == batch_ids[None, :]).astype(jnp.float32)
        sadd_mask = (smask - 1.0) * 1e9                       # additive self-attn mask

        # fold[b*HW + h, h] = 1 : sums masked attention over the batch axis on the MXU
        fold = jnp.tile(jnp.eye(HW, HWp, dtype=jnp.float32), (B, 1))    # [B*HW, HWp]

        pad = HWp - HW
        seg0 = jnp.pad(seg_maps.reshape(N, HW), ((0, 0), (0, pad)))
        curio0 = jnp.pad(curio_maps.reshape(N, HW), ((0, 0), (0, pad)))

        ca, sa, ffn = self.cross_attention, self.self_attention, self.ffn
        wqkv_s = jnp.concatenate([sa.wq, sa.wk, sa.wv], axis=1)          # fused [D, 3D]

        slots_o, seg_o, curio_o, loss_o = _fused_decoder_call(
            feats_b, featpos_b, cadd_mask, sel_mask, fold,
            ca.wq, ca.wk, ca.wv, ca.wo,
            sadd_mask, wqkv_s, sa.wo,
            ffn.w1, ffn.b1, ffn.w2, ffn.b2,
            slots[0], seg0, curio0,
            HW, self.num_iterations, self.iteration_type)

        return (slots_o[None],
                seg_o[:, :HW].reshape(N, fH, fW),
                loss_o.reshape(1),
                curio_o[:, :HW].reshape(N, fH, fW))


# ---------------------------------------------------------------------------
# main
# ---------------------------------------------------------------------------
if __name__ == "__main__":
    key = jax.random.PRNGKey(0)
    keys = jax.random.split(key, 8)

    B, fH, fW, D = 2, 8, 8, 32
    HW = fH * fW
    N = 4                    # num_slots_total (2 slots per batch element)
    hidden = 64

    features = jax.random.normal(keys[0], (HW, B, D), jnp.float32)
    pos = jax.random.normal(keys[1], (HW, B, D), jnp.float32)
    slots = jax.random.normal(keys[2], (1, N, D), jnp.float32)
    batch_ids = jnp.array([0, 0, 1, 1], jnp.int32)
    seg_maps = jax.random.normal(keys[3], (N, fH, fW), jnp.float32)
    curio_maps = jax.random.normal(keys[4], (N, fH, fW), jnp.float32)
    max_mask_entries = 0
    shared_items = {'cross_scale': 1.0, 'self_scale': 1.0}

    cross = CrossAttention(D, keys[5])
    self_attn = SelfAttention(D, keys[6])
    ffn = FFN(D, hidden, keys[7])

    layer_outside = SampleDecoderLayer(cross, self_attn, ffn,
                                       {'num_iterations': 2, 'type': 'outside'})
    layer_inside = SampleDecoderLayer(cross, self_attn, ffn,
                                      {'num_iterations': 2, 'type': 'inside'})

    run_outside = jax.jit(lambda f, p, s, b, sg, c: layer_outside(
        f, p, s, b, sg, c, max_mask_entries, shared_items))
    run_inside = jax.jit(lambda f, p, s, b, sg, c: layer_inside(
        f, p, s, b, sg, c, max_mask_entries, shared_items))

    out = jax.block_until_ready(
        run_outside(features, pos, slots, batch_ids, seg_maps, curio_maps))
    slots_o, seg_o, loss_o, curio_o = out
    assert slots_o.shape == (1, N, D)
    assert seg_o.shape == (N, fH, fW)
    assert loss_o.shape == (1,)
    assert curio_o.shape == (N, fH, fW)
    assert bool(jnp.all(jnp.isfinite(slots_o))) and bool(jnp.all(jnp.isfinite(loss_o)))
    assert bool(jnp.all(jnp.isfinite(seg_o))) and bool(jnp.all(jnp.isfinite(curio_o)))

    out_in = jax.block_until_ready(
        run_inside(features, pos, slots, batch_ids, seg_maps, curio_maps))
    assert out_in[0].shape == (1, N, D) and out_in[2].shape == (1,)
    assert bool(jnp.all(jnp.isfinite(out_in[0]))) and bool(jnp.all(jnp.isfinite(out_in[2])))

    print("KERNEL_OK")
</pallas_src>

<mosaic_0001>
module attributes {stable_mosaic.version = 11 : i64} {
  func.func @kernel(%arg0: i32, %arg1: memref<128x32xf32, #tpu.memory_space<vmem>>, %arg2: memref<128x32xf32, #tpu.memory_space<vmem>>, %arg3: memref<4x128xf32, #tpu.memory_space<vmem>>, %arg4: memref<4x128xf32, #tpu.memory_space<vmem>>, %arg5: memref<128x128xf32, #tpu.memory_space<vmem>>, %arg6: memref<32x32xf32, #tpu.memory_space<vmem>>, %arg7: memref<32x32xf32, #tpu.memory_space<vmem>>, %arg8: memref<32x32xf32, #tpu.memory_space<vmem>>, %arg9: memref<32x32xf32, #tpu.memory_space<vmem>>, %arg10: memref<4x4xf32, #tpu.memory_space<vmem>>, %arg11: memref<32x96xf32, #tpu.memory_space<vmem>>, %arg12: memref<32x32xf32, #tpu.memory_space<vmem>>, %arg13: memref<32x64xf32, #tpu.memory_space<vmem>>, %arg14: memref<1x64xf32, #tpu.memory_space<vmem>>, %arg15: memref<64x32xf32, #tpu.memory_space<vmem>>, %arg16: memref<1x32xf32, #tpu.memory_space<vmem>>, %arg17: memref<4x32xf32, #tpu.memory_space<vmem>>, %arg18: memref<4x128xf32, #tpu.memory_space<vmem>>, %arg19: memref<4x128xf32, #tpu.memory_space<vmem>>, %arg20: memref<4x32xf32, #tpu.memory_space<vmem>>, %arg21: memref<4x128xf32, #tpu.memory_space<vmem>>, %arg22: memref<4x128xf32, #tpu.memory_space<vmem>>, %arg23: memref<1x1xf32, #tpu.memory_space<vmem>>, %arg24: memref<128x32xf32, #tpu.memory_space<vmem>>, %arg25: memref<128x32xf32, #tpu.memory_space<vmem>>, %arg26: memref<4x32xf32, #tpu.memory_space<vmem>>, %arg27: memref<4x128xf32, #tpu.memory_space<vmem>>, %arg28: memref<4x128xf32, #tpu.memory_space<vmem>>, %arg29: memref<1x1xf32, #tpu.memory_space<vmem>>) attributes {dimension_semantics = [#tpu.dimension_semantics<arbitrary>], iteration_bounds = array<i64: 2>, scalar_prefetch = 0 : i64, scratch_operands = 6 : i64, tpu.core_type = #tpu.core_type<tc>, window_params = [{pipeline_mode = #tpu.pipeline_mode<synchronous>, transform_indices = @transform_0, window_bounds = array<i64: 128, 32>}, {pipeline_mode = #tpu.pipeline_mode<synchronous>, transform_indices = @transform_1, window_bounds = array<i64: 128, 32>}, {pipeline_mode = #tpu.pipeline_mode<synchronous>, transform_indices = @transform_2, window_bounds = array<i64: 4, 128>}, {pipeline_mode = #tpu.pipeline_mode<synchronous>, transform_indices = @transform_3, window_bounds = array<i64: 4, 128>}, {pipeline_mode = #tpu.pipeline_mode<synchronous>, transform_indices = @transform_4, window_bounds = array<i64: 128, 128>}, {pipeline_mode = #tpu.pipeline_mode<synchronous>, transform_indices = @transform_5, window_bounds = array<i64: 32, 32>}, {pipeline_mode = #tpu.pipeline_mode<synchronous>, transform_indices = @transform_6, window_bounds = array<i64: 32, 32>}, {pipeline_mode = #tpu.pipeline_mode<synchronous>, transform_indices = @transform_7, window_bounds = array<i64: 32, 32>}, {pipeline_mode = #tpu.pipeline_mode<synchronous>, transform_indices = @transform_8, window_bounds = array<i64: 32, 32>}, {pipeline_mode = #tpu.pipeline_mode<synchronous>, transform_indices = @transform_9, window_bounds = array<i64: 4, 4>}, {pipeline_mode = #tpu.pipeline_mode<synchronous>, transform_indices = @transform_10, window_bounds = array<i64: 32, 96>}, {pipeline_mode = #tpu.pipeline_mode<synchronous>, transform_indices = @transform_11, window_bounds = array<i64: 32, 32>}, {pipeline_mode = #tpu.pipeline_mode<synchronous>, transform_indices = @transform_12, window_bounds = array<i64: 32, 64>}, {pipeline_mode = #tpu.pipeline_mode<synchronous>, transform_indices = @transform_13, window_bounds = array<i64: 1, 64>}, {pipeline_mode = #tpu.pipeline_mode<synchronous>, transform_indices = @transform_14, window_bounds = array<i64: 64, 32>}, {pipeline_mode = #tpu.pipeline_mode<synchronous>, transform_indices = @transform_15, window_bounds = array<i64: 1, 32>}, {pipeline_mode = #tpu.pipeline_mode<synchronous>, transform_indices = @transform_16, window_bounds = array<i64: 4, 32>}, {pipeline_mode = #tpu.pipeline_mode<synchronous>, transform_indices = @transform_17, window_bounds = array<i64: 4, 128>}, {pipeline_mode = #tpu.pipeline_mode<synchronous>, transform_indices = @transform_18, window_bounds = array<i64: 4, 128>}, {pipeline_mode = #tpu.pipeline_mode<synchronous>, transform_indices = @transform_19, window_bounds = array<i64: 4, 32>}, {pipeline_mode = #tpu.pipeline_mode<synchronous>, transform_indices = @transform_20, window_bounds = array<i64: 4, 128>}, {pipeline_mode = #tpu.pipeline_mode<synchronous>, transform_indices = @transform_21, window_bounds = array<i64: 4, 128>}, {pipeline_mode = #tpu.pipeline_mode<synchronous>, transform_indices = @transform_22, window_bounds = array<i64: 1, 1>}]} {
    %c0_i32 = arith.constant 0 : i32
    %0 = arith.cmpi eq, %arg0, %c0_i32 : i32
    %1 = arith.extui %0 : i1 to i32
    %c0_i32_0 = arith.constant 0 : i32
    %2 = arith.cmpi ne, %1, %c0_i32_0 : i32
    scf.if %2 {
      %c0_68 = arith.constant 0 : index
      %c0_69 = arith.constant 0 : index
      %95 = vector.load %arg2[%c0_68, %c0_69] : memref<128x32xf32, #tpu.memory_space<vmem>>, vector<128x32xf32>
      %c0_70 = arith.constant 0 : index
      %c0_71 = arith.constant 0 : index
      %96 = vector.load %arg7[%c0_70, %c0_71] : memref<32x32xf32, #tpu.memory_space<vmem>>, vector<32x32xf32>
      %cst_72 = arith.constant dense<0.000000e+00> : vector<128x32xf32>
      %97 = tpu.matmul %95, %96, %cst_72 {dimension_numbers = #tpu.dot_dimension_numbers<[1], [0], [0], [1], [0, 0, 1, 1], [], []>} : vector<128x32xf32>, vector<32x32xf32>, vector<128x32xf32> -> vector<128x32xf32>
      %c0_73 = arith.constant 0 : index
      %c0_74 = arith.constant 0 : index
      %98 = vector.load %arg24[%c0_73, %c0_74] : memref<128x32xf32, #tpu.memory_space<vmem>>, vector<128x32xf32>
      tpu.vector_store %arg24[%c0_73, %c0_74], %97 {strides = array<i32>} : memref<128x32xf32, #tpu.memory_space<vmem>>, vector<128x32xf32>,
      %c0_75 = arith.constant 0 : index
      %c0_76 = arith.constant 0 : index
      %99 = vector.load %arg1[%c0_75, %c0_76] : memref<128x32xf32, #tpu.memory_space<vmem>>, vector<128x32xf32>
      %c0_77 = arith.constant 0 : index
      %c0_78 = arith.constant 0 : index
      %100 = vector.load %arg8[%c0_77, %c0_78] : memref<32x32xf32, #tpu.memory_space<vmem>>, vector<32x32xf32>
      %cst_79 = arith.constant dense<0.000000e+00> : vector<128x32xf32>
      %101 = tpu.matmul %99, %100, %cst_79 {dimension_numbers = #tpu.dot_dimension_numbers<[1], [0], [0], [1], [0, 0, 1, 1], [], []>} : vector<128x32xf32>, vector<32x32xf32>, vector<128x32xf32> -> vector<128x32xf32>
      %c0_80 = arith.constant 0 : index
      %c0_81 = arith.constant 0 : index
      %102 = vector.load %arg25[%c0_80, %c0_81] : memref<128x32xf32, #tpu.memory_space<vmem>>, vector<128x32xf32>
      tpu.vector_store %arg25[%c0_80, %c0_81], %101 {strides = array<i32>} : memref<128x32xf32, #tpu.memory_space<vmem>>, vector<128x32xf32>,
      %c0_82 = arith.constant 0 : index
      %c0_83 = arith.constant 0 : index
      %103 = vector.load %arg17[%c0_82, %c0_83] : memref<4x32xf32, #tpu.memory_space<vmem>>, vector<4x32xf32>
      %c0_84 = arith.constant 0 : index
      %c0_85 = arith.constant 0 : index
      %104 = vector.load %arg26[%c0_84, %c0_85] : memref<4x32xf32, #tpu.memory_space<vmem>>, vector<4x32xf32>
      tpu.vector_store %arg26[%c0_84, %c0_85], %103 {strides = array<i32>} : memref<4x32xf32, #tpu.memory_space<vmem>>, vector<4x32xf32>,
      %c0_86 = arith.constant 0 : index
      %c0_87 = arith.constant 0 : index
      %105 = vector.load %arg18[%c0_86, %c0_87] : memref<4x128xf32, #tpu.memory_space<vmem>>, vector<4x128xf32>
      %c0_88 = arith.constant 0 : index
      %c0_89 = arith.constant 0 : index
      %106 = vector.load %arg27[%c0_88, %c0_89] : memref<4x128xf32, #tpu.memory_space<vmem>>, vector<4x128xf32>
      tpu.vector_store %arg27[%c0_88, %c0_89], %105 {strides = array<i32>} : memref<4x128xf32, #tpu.memory_space<vmem>>, vector<4x128xf32>,
      %c0_90 = arith.constant 0 : index
      %c0_91 = arith.constant 0 : index
      %107 = vector.load %arg19[%c0_90, %c0_91] : memref<4x128xf32, #tpu.memory_space<vmem>>, vector<4x128xf32>
      %c0_92 = arith.constant 0 : index
      %c0_93 = arith.constant 0 : index
      %108 = vector.load %arg28[%c0_92, %c0_93] : memref<4x128xf32, #tpu.memory_space<vmem>>, vector<4x128xf32>
      tpu.vector_store %arg28[%c0_92, %c0_93], %107 {strides = array<i32>} : memref<4x128xf32, #tpu.memory_space<vmem>>, vector<4x128xf32>,
      %cst_94 = arith.constant 0.000000e+00 : f32
      %109 = vector.broadcast %cst_94 : f32 to vector<1x1xf32>
      %c0_95 = arith.constant 0 : index
      %c0_96 = arith.constant 0 : index
      %110 = vector.load %arg29[%c0_95, %c0_96] : memref<1x1xf32, #tpu.memory_space<vmem>>, vector<1x1xf32>
      tpu.vector_store %arg29[%c0_95, %c0_96], %109 {strides = array<i32>} : memref<1x1xf32, #tpu.memory_space<vmem>>, vector<1x1xf32>,
    } else {
    }
    %c0 = arith.constant 0 : index
    %c0_1 = arith.constant 0 : index
    %3 = vector.load %arg26[%c0, %c0_1] : memref<4x32xf32, #tpu.memory_space<vmem>>, vector<4x32xf32>
    %c0_2 = arith.constant 0 : index
    %c0_3 = arith.constant 0 : index
    %4 = vector.load %arg27[%c0_2, %c0_3] : memref<4x128xf32, #tpu.memory_space<vmem>>, vector<4x128xf32>
    %c0_4 = arith.constant 0 : index
    %c0_5 = arith.constant 0 : index
    %5 = vector.load %arg28[%c0_4, %c0_5] : memref<4x128xf32, #tpu.memory_space<vmem>>, vector<4x128xf32>
    %c0_6 = arith.constant 0 : index
    %c0_7 = arith.constant 0 : index
    %6 = vector.load %arg6[%c0_6, %c0_7] : memref<32x32xf32, #tpu.memory_space<vmem>>, vector<32x32xf32>
    %cst = arith.constant dense<0.000000e+00> : vector<4x32xf32>
    %7 = tpu.matmul %3, %6, %cst {dimension_numbers = #tpu.dot_dimension_numbers<[1], [0], [0], [1], [0, 0, 1, 1], [], []>} : vector<4x32xf32>, vector<32x32xf32>, vector<4x32xf32> -> vector<4x32xf32>
    %cst_8 = arith.constant 0.176776692 : f32
    %8 = vector.broadcast %cst_8 : f32 to vector<4x32xf32>
    %9 = arith.mulf %7, %8 : vector<4x32xf32>
    %c0_9 = arith.constant 0 : index
    %c0_10 = arith.constant 0 : index
    %10 = vector.load %arg24[%c0_9, %c0_10] : memref<128x32xf32, #tpu.memory_space<vmem>>, vector<128x32xf32>
    %cst_11 = arith.constant dense<0.000000e+00> : vector<4x128xf32>
    %11 = tpu.matmul %9, %10, %cst_11 {dimension_numbers = #tpu.dot_dimension_numbers<[1], [1], [0], [0], [0, 0, 1, 0], [], []>} : vector<4x32xf32>, vector<128x32xf32>, vector<4x128xf32> -> vector<4x128xf32>
    %c0_12 = arith.constant 0 : index
    %c0_13 = arith.constant 0 : index
    %12 = vector.load %arg3[%c0_12, %c0_13] : memref<4x128xf32, #tpu.memory_space<vmem>>, vector<4x128xf32>
    %13 = arith.addf %11, %12 : vector<4x128xf32>
    %cst_14 = arith.constant dense<0xFF800000> : vector<4xf32>
    %14 = vector.multi_reduction <maximumf>, %13, %cst_14 [1] : vector<4x128xf32> to vector<4xf32>
    %15 = vector.shape_cast %14 : vector<4xf32> to vector<4x1xf32>
    %16 = vector.broadcast %15 : vector<4x1xf32> to vector<4x128xf32>
    %17 = arith.subf %13, %16 : vector<4x128xf32>
    %18 = math.exp %17 : vector<4x128xf32>
    %cst_15 = arith.constant dense<0.000000e+00> : vector<4xf32>
    %19 = vector.multi_reduction <add>, %18, %cst_15 [1] : vector<4x128xf32> to vector<4xf32>
    %20 = vector.shape_cast %19 : vector<4xf32> to vector<4x1xf32>
    %21 = tpu.reciprocal %20 {approx = true} : vector<4x1xf32> -> vector<4x1xf32>
    %22 = vector.broadcast %21 : vector<4x1xf32> to vector<4x128xf32>
    %23 = arith.mulf %18, %22 : vector<4x128xf32>
    %c0_16 = arith.constant 0 : index
    %c0_17 = arith.constant 0 : index
    %24 = vector.load %arg25[%c0_16, %c0_17] : memref<128x32xf32, #tpu.memory_space<vmem>>, vector<128x32xf32>
    %cst_18 = arith.constant dense<0.000000e+00> : vector<4x32xf32>
    %25 = tpu.matmul %23, %24, %cst_18 {dimension_numbers = #tpu.dot_dimension_numbers<[1], [0], [0], [1], [0, 0, 1, 1], [], []>} : vector<4x128xf32>, vector<128x32xf32>, vector<4x32xf32> -> vector<4x32xf32>
    %c0_19 = arith.constant 0 : index
    %c0_20 = arith.constant 0 : index
    %26 = vector.load %arg9[%c0_19, %c0_20] : memref<32x32xf32, #tpu.memory_space<vmem>>, vector<32x32xf32>
    %cst_21 = arith.constant dense<0.000000e+00> : vector<4x32xf32>
    %27 = tpu.matmul %25, %26, %cst_21 {dimension_numbers = #tpu.dot_dimension_numbers<[1], [0], [0], [1], [0, 0, 1, 1], [], []>} : vector<4x32xf32>, vector<32x32xf32>, vector<4x32xf32> -> vector<4x32xf32>
    %28 = arith.addf %3, %27 : vector<4x32xf32>
    %c0_22 = arith.constant 0 : index
    %c0_23 = arith.constant 0 : index
    %29 = vector.load %arg4[%c0_22, %c0_23] : memref<4x128xf32, #tpu.memory_space<vmem>>, vector<4x128xf32>
    %30 = arith.mulf %23, %29 : vector<4x128xf32>
    %c0_24 = arith.constant 0 : index
    %c0_25 = arith.constant 0 : index
    %31 = vector.load %arg5[%c0_24, %c0_25] : memref<128x128xf32, #tpu.memory_space<vmem>>, vector<128x128xf32>
    %cst_26 = arith.constant dense<0.000000e+00> : vector<4x128xf32>
    %32 = tpu.matmul %30, %31, %cst_26 {dimension_numbers = #tpu.dot_dimension_numbers<[1], [0], [0], [1], [0, 0, 1, 1], [], []>} : vector<4x128xf32>, vector<128x128xf32>, vector<4x128xf32> -> vector<4x128xf32>
    %33 = arith.addf %4, %32 : vector<4x128xf32>
    %cst_27 = arith.constant 6.400000e+01 : f32
    %34 = vector.broadcast %cst_27 : f32 to vector<4x128xf32>
    %35 = arith.mulf %32, %34 : vector<4x128xf32>
    %36 = arith.subf %35, %5 : vector<4x128xf32>
    %37 = arith.mulf %36, %36 : vector<4x128xf32>
    %cst_28 = arith.constant dense<0.000000e+00> : vector<4xf32>
    %38 = vector.multi_reduction <add>, %37, %cst_28 [1] : vector<4x128xf32> to vector<4xf32>
    %39 = vector.shape_cast %38 : vector<4xf32> to vector<4x1xf32>
    %cst_29 = arith.constant dense<0.000000e+00> : vector<1xf32>
    %40 = vector.multi_reduction <add>, %39, %cst_29 [0] : vector<4x1xf32> to vector<1xf32>
    %41 = vector.shape_cast %40 : vector<1xf32> to vector<1x1xf32>
    %cst_30 = arith.constant 3.906250e-03 : f32
    %42 = vector.broadcast %cst_30 : f32 to vector<1x1xf32>
    %43 = arith.mulf %41, %42 : vector<1x1xf32>
    %c0_31 = arith.constant 0 : index
    %c0_32 = arith.constant 0 : index
    %44 = vector.load %arg29[%c0_31, %c0_32] : memref<1x1xf32, #tpu.memory_space<vmem>>, vector<1x1xf32>
    %45 = arith.addf %44, %43 : vector<1x1xf32>
    %c0_33 = arith.constant 0 : index
    %c0_34 = arith.constant 0 : index
    %46 = vector.load %arg29[%c0_33, %c0_34] : memref<1x1xf32, #tpu.memory_space<vmem>>, vector<1x1xf32>
    tpu.vector_store %arg29[%c0_33, %c0_34], %45 {strides = array<i32>} : memref<1x1xf32, #tpu.memory_space<vmem>>, vector<1x1xf32>,
    %cst_35 = arith.constant 0.899999976 : f32
    %47 = vector.broadcast %cst_35 : f32 to vector<4x128xf32>
    %48 = arith.mulf %47, %5 : vector<4x128xf32>
    %cst_36 = arith.constant 1.000000e-01 : f32
    %49 = vector.broadcast %cst_36 : f32 to vector<4x128xf32>
    %50 = arith.mulf %49, %35 : vector<4x128xf32>
    %51 = arith.addf %48, %50 : vector<4x128xf32>
    %c0_37 = arith.constant 0 : index
    %c0_38 = arith.constant 0 : index
    %52 = vector.load %arg27[%c0_37, %c0_38] : memref<4x128xf32, #tpu.memory_space<vmem>>, vector<4x128xf32>
    tpu.vector_store %arg27[%c0_37, %c0_38], %33 {strides = array<i32>} : memref<4x128xf32, #tpu.memory_space<vmem>>, vector<4x128xf32>,
    %c0_39 = arith.constant 0 : index
    %c0_40 = arith.constant 0 : index
    %53 = vector.load %arg28[%c0_39, %c0_40] : memref<4x128xf32, #tpu.memory_space<vmem>>, vector<4x128xf32>
    tpu.vector_store %arg28[%c0_39, %c0_40], %51 {strides = array<i32>} : memref<4x128xf32, #tpu.memory_space<vmem>>, vector<4x128xf32>,
    %c0_41 = arith.constant 0 : index
    %c0_42 = arith.constant 0 : index
    %54 = vector.load %arg11[%c0_41, %c0_42] : memref<32x96xf32, #tpu.memory_space<vmem>>, vector<32x96xf32>
    %cst_43 = arith.constant dense<0.000000e+00> : vector<4x96xf32>
    %55 = tpu.matmul %28, %54, %cst_43 {dimension_numbers = #tpu.dot_dimension_numbers<[1], [0], [0], [1], [0, 0, 1, 1], [], []>} : vector<4x32xf32>, vector<32x96xf32>, vector<4x96xf32> -> vector<4x96xf32>
    %56 = vector.extract_strided_slice %55 {offsets = [0, 0], sizes = [4, 32], strides = [1, 1]} : vector<4x96xf32> to vector<4x32xf32>
    %cst_44 = arith.constant 0.176776692 : f32
    %57 = vector.broadcast %cst_44 : f32 to vector<4x32xf32>
    %58 = arith.mulf %56, %57 : vector<4x32xf32>
    %59 = vector.extract_strided_slice %55 {offsets = [0, 32], sizes = [4, 32], strides = [1, 1]} : vector<4x96xf32> to vector<4x32xf32>
    %60 = vector.extract_strided_slice %55 {offsets = [0, 64], sizes = [4, 32], strides = [1, 1]} : vector<4x96xf32> to vector<4x32xf32>
    %cst_45 = arith.constant dense<0.000000e+00> : vector<4x4xf32>
    %61 = tpu.matmul %58, %59, %cst_45 {dimension_numbers = #tpu.dot_dimension_numbers<[1], [1], [0], [0], [0, 0, 1, 0], [], []>} : vector<4x32xf32>, vector<4x32xf32>, vector<4x4xf32> -> vector<4x4xf32>
    %c0_46 = arith.constant 0 : index
    %c0_47 = arith.constant 0 : index
    %62 = vector.load %arg10[%c0_46, %c0_47] : memref<4x4xf32, #tpu.memory_space<vmem>>, vector<4x4xf32>
    %63 = arith.addf %61, %62 : vector<4x4xf32>
    %cst_48 = arith.constant dense<0xFF800000> : vector<4xf32>
    %64 = vector.multi_reduction <maximumf>, %63, %cst_48 [1] : vector<4x4xf32> to vector<4xf32>
    %65 = vector.shape_cast %64 : vector<4xf32> to vector<4x1xf32>
    %66 = vector.broadcast %65 : vector<4x1xf32> to vector<4x4xf32>
    %67 = arith.subf %63, %66 : vector<4x4xf32>
    %68 = math.exp %67 : vector<4x4xf32>
    %cst_49 = arith.constant dense<0.000000e+00> : vector<4xf32>
    %69 = vector.multi_reduction <add>, %68, %cst_49 [1] : vector<4x4xf32> to vector<4xf32>
    %70 = vector.shape_cast %69 : vector<4xf32> to vector<4x1xf32>
    %71 = tpu.reciprocal %70 {approx = true} : vector<4x1xf32> -> vector<4x1xf32>
    %72 = vector.broadcast %71 : vector<4x1xf32> to vector<4x4xf32>
    %73 = arith.mulf %68, %72 : vector<4x4xf32>
    %cst_50 = arith.constant dense<0.000000e+00> : vector<4x32xf32>
    %74 = tpu.matmul %73, %60, %cst_50 {dimension_numbers = #tpu.dot_dimension_numbers<[1], [0], [0], [1], [0, 0, 1, 1], [], []>} : vector<4x4xf32>, vector<4x32xf32>, vector<4x32xf32> -> vector<4x32xf32>
    %c0_51 = arith.constant 0 : index
    %c0_52 = arith.constant 0 : index
    %75 = vector.load %arg12[%c0_51, %c0_52] : memref<32x32xf32, #tpu.memory_space<vmem>>, vector<32x32xf32>
    %cst_53 = arith.constant dense<0.000000e+00> : vector<4x32xf32>
    %76 = tpu.matmul %74, %75, %cst_53 {dimension_numbers = #tpu.dot_dimension_numbers<[1], [0], [0], [1], [0, 0, 1, 1], [], []>} : vector<4x32xf32>, vector<32x32xf32>, vector<4x32xf32> -> vector<4x32xf32>
    %77 = arith.addf %28, %76 : vector<4x32xf32>
    %c0_54 = arith.constant 0 : index
    %c0_55 = arith.constant 0 : index
    %78 = vector.load %arg13[%c0_54, %c0_55] : memref<32x64xf32, #tpu.memory_space<vmem>>, vector<32x64xf32>
    %cst_56 = arith.constant dense<0.000000e+00> : vector<4x64xf32>
    %79 = tpu.matmul %77, %78, %cst_56 {dimension_numbers = #tpu.dot_dimension_numbers<[1], [0], [0], [1], [0, 0, 1, 1], [], []>} : vector<4x32xf32>, vector<32x64xf32>, vector<4x64xf32> -> vector<4x64xf32>
    %c0_57 = arith.constant 0 : index
    %c0_58 = arith.constant 0 : index
    %80 = vector.load %arg14[%c0_57, %c0_58] : memref<1x64xf32, #tpu.memory_space<vmem>>, vector<1x64xf32>
    %81 = vector.broadcast %80 : vector<1x64xf32> to vector<4x64xf32>
    %82 = arith.addf %79, %81 : vector<4x64xf32>
    %cst_59 = arith.constant 0.000000e+00 : f32
    %83 = vector.broadcast %cst_59 : f32 to vector<4x64xf32>
    %84 = arith.maximumf %82, %83 : vector<4x64xf32>
    %c0_60 = arith.constant 0 : index
    %c0_61 = arith.constant 0 : index
    %85 = vector.load %arg15[%c0_60, %c0_61] : memref<64x32xf32, #tpu.memory_space<vmem>>, vector<64x32xf32>
    %cst_62 = arith.constant dense<0.000000e+00> : vector<4x32xf32>
    %86 = tpu.matmul %84, %85, %cst_62 {dimension_numbers = #tpu.dot_dimension_numbers<[1], [0], [0], [1], [0, 0, 1, 1], [], []>} : vector<4x64xf32>, vector<64x32xf32>, vector<4x32xf32> -> vector<4x32xf32>
    %87 = arith.addf %77, %86 : vector<4x32xf32>
    %c0_63 = arith.constant 0 : index
    %c0_64 = arith.constant 0 : index
    %88 = vector.load %arg16[%c0_63, %c0_64] : memref<1x32xf32, #tpu.memory_space<vmem>>, vector<1x32xf32>
    %89 = vector.broadcast %88 : vector<1x32xf32> to vector<4x32xf32>
    %90 = arith.addf %87, %89 : vector<4x32xf32>
    %c0_65 = arith.constant 0 : index
    %c0_66 = arith.constant 0 : index
    %91 = vector.load %arg26[%c0_65, %c0_66] : memref<4x32xf32, #tpu.memory_space<vmem>>, vector<4x32xf32>
    tpu.vector_store %arg26[%c0_65, %c0_66], %90 {strides = array<i32>} : memref<4x32xf32, #tpu.memory_space<vmem>>, vector<4x32xf32>,
    %c1_i32 = arith.constant 1 : i32
    %92 = arith.cmpi eq, %arg0, %c1_i32 : i32
    %93 = arith.extui %92 : i1 to i32
    %c0_i32_67 = arith.constant 0 : i32
    %94 = arith.cmpi ne, %93, %c0_i32_67 : i32
    scf.if %94 {
      %c0_68 = arith.constant 0 : index
      %c0_69 = arith.constant 0 : index
      %95 = vector.load %arg26[%c0_68, %c0_69] : memref<4x32xf32, #tpu.memory_space<vmem>>, vector<4x32xf32>
      %c0_70 = arith.constant 0 : index
      %c0_71 = arith.constant 0 : index
      %96 = vector.load %arg20[%c0_70, %c0_71] : memref<4x32xf32, #tpu.memory_space<vmem>>, vector<4x32xf32>
      tpu.vector_store %arg20[%c0_70, %c0_71], %95 {strides = array<i32>} : memref<4x32xf32, #tpu.memory_space<vmem>>, vector<4x32xf32>,
      %c0_72 = arith.constant 0 : index
      %c0_73 = arith.constant 0 : index
      %97 = vector.load %arg27[%c0_72, %c0_73] : memref<4x128xf32, #tpu.memory_space<vmem>>, vector<4x128xf32>
      %c0_74 = arith.constant 0 : index
      %c0_75 = arith.constant 0 : index
      %98 = vector.load %arg21[%c0_74, %c0_75] : memref<4x128xf32, #tpu.memory_space<vmem>>, vector<4x128xf32>
      tpu.vector_store %arg21[%c0_74, %c0_75], %97 {strides = array<i32>} : memref<4x128xf32, #tpu.memory_space<vmem>>, vector<4x128xf32>,
      %c0_76 = arith.constant 0 : index
      %c0_77 = arith.constant 0 : index
      %99 = vector.load %arg28[%c0_76, %c0_77] : memref<4x128xf32, #tpu.memory_space<vmem>>, vector<4x128xf32>
      %c0_78 = arith.constant 0 : index
      %c0_79 = arith.constant 0 : index
      %100 = vector.load %arg22[%c0_78, %c0_79] : memref<4x128xf32, #tpu.memory_space<vmem>>, vector<4x128xf32>
      tpu.vector_store %arg22[%c0_78, %c0_79], %99 {strides = array<i32>} : memref<4x128xf32, #tpu.memory_space<vmem>>, vector<4x128xf32>,
      %c0_80 = arith.constant 0 : index
      %c0_81 = arith.constant 0 : index
      %101 = vector.load %arg29[%c0_80, %c0_81] : memref<1x1xf32, #tpu.memory_space<vmem>>, vector<1x1xf32>
      %cst_82 = arith.constant 5.000000e-01 : f32
      %102 = vector.broadcast %cst_82 : f32 to vector<1x1xf32>
      %103 = arith.mulf %101, %102 : vector<1x1xf32>
      %c0_83 = arith.constant 0 : index
      %c0_84 = arith.constant 0 : index
      %104 = vector.load %arg23[%c0_83, %c0_84] : memref<1x1xf32, #tpu.memory_space<vmem>>, vector<1x1xf32>
      tpu.vector_store %arg23[%c0_83, %c0_84], %103 {strides = array<i32>} : memref<1x1xf32, #tpu.memory_space<vmem>>, vector<1x1xf32>,
    } else {
    }
    return
  }
  func.func @transform_0(%arg0: i32) -> (i32, i32) {
    %c0_i32 = arith.constant 0 : i32
    %c0_i32_0 = arith.constant 0 : i32
    %c0_i32_1 = arith.constant 0 : i32
    return %c0_i32, %c0_i32_0 : i32, i32
  }
  func.func @transform_1(%arg0: i32) -> (i32, i32) {
    %c0_i32 = arith.constant 0 : i32
    %c0_i32_0 = arith.constant 0 : i32
    %c0_i32_1 = arith.constant 0 : i32
    return %c0_i32, %c0_i32_0 : i32, i32
  }
  func.func @transform_2(%arg0: i32) -> (i32, i32) {
    %c0_i32 = arith.constant 0 : i32
    %c0_i32_0 = arith.constant 0 : i32
    %c0_i32_1 = arith.constant 0 : i32
    return %c0_i32, %c0_i32_0 : i32, i32
  }
  func.func @transform_3(%arg0: i32) -> (i32, i32) {
    %c0_i32 = arith.constant 0 : i32
    %c0_i32_0 = arith.constant 0 : i32
    %c0_i32_1 = arith.constant 0 : i32
    return %c0_i32, %c0_i32_0 : i32, i32
  }
  func.func @transform_4(%arg0: i32) -> (i32, i32) {
    %c0_i32 = arith.constant 0 : i32
    %c0_i32_0 = arith.constant 0 : i32
    %c0_i32_1 = arith.constant 0 : i32
    return %c0_i32, %c0_i32_0 : i32, i32
  }
  func.func @transform_5(%arg0: i32) -> (i32, i32) {
    %c0_i32 = arith.constant 0 : i32
    %c0_i32_0 = arith.constant 0 : i32
    %c0_i32_1 = arith.constant 0 : i32
    return %c0_i32, %c0_i32_0 : i32, i32
  }
  func.func @transform_6(%arg0: i32) -> (i32, i32) {
    %c0_i32 = arith.constant 0 : i32
    %c0_i32_0 = arith.constant 0 : i32
    %c0_i32_1 = arith.constant 0 : i32
    return %c0_i32, %c0_i32_0 : i32, i32
  }
  func.func @transform_7(%arg0: i32) -> (i32, i32) {
    %c0_i32 = arith.constant 0 : i32
    %c0_i32_0 = arith.constant 0 : i32
    %c0_i32_1 = arith.constant 0 : i32
    return %c0_i32, %c0_i32_0 : i32, i32
  }
  func.func @transform_8(%arg0: i32) -> (i32, i32) {
    %c0_i32 = arith.constant 0 : i32
    %c0_i32_0 = arith.constant 0 : i32
    %c0_i32_1 = arith.constant 0 : i32
    return %c0_i32, %c0_i32_0 : i32, i32
  }
  func.func @transform_9(%arg0: i32) -> (i32, i32) {
    %c0_i32 = arith.constant 0 : i32
    %c0_i32_0 = arith.constant 0 : i32
    %c0_i32_1 = arith.constant 0 : i32
    return %c0_i32, %c0_i32_0 : i32, i32
  }
  func.func @transform_10(%arg0: i32) -> (i32, i32) {
    %c0_i32 = arith.constant 0 : i32
    %c0_i32_0 = arith.constant 0 : i32
    %c0_i32_1 = arith.constant 0 : i32
    return %c0_i32, %c0_i32_0 : i32, i32
  }
  func.func @transform_11(%arg0: i32) -> (i32, i32) {
    %c0_i32 = arith.constant 0 : i32
    %c0_i32_0 = arith.constant 0 : i32
    %c0_i32_1 = arith.constant 0 : i32
    return %c0_i32, %c0_i32_0 : i32, i32
  }
  func.func @transform_12(%arg0: i32) -> (i32, i32) {
    %c0_i32 = arith.constant 0 : i32
    %c0_i32_0 = arith.constant 0 : i32
    %c0_i32_1 = arith.constant 0 : i32
    return %c0_i32, %c0_i32_0 : i32, i32
  }
  func.func @transform_13(%arg0: i32) -> (i32, i32) {
    %c0_i32 = arith.constant 0 : i32
    %c0_i32_0 = arith.constant 0 : i32
    %c0_i32_1 = arith.constant 0 : i32
    return %c0_i32, %c0_i32_0 : i32, i32
  }
  func.func @transform_14(%arg0: i32) -> (i32, i32) {
    %c0_i32 = arith.constant 0 : i32
    %c0_i32_0 = arith.constant 0 : i32
    %c0_i32_1 = arith.constant 0 : i32
    return %c0_i32, %c0_i32_0 : i32, i32
  }
  func.func @transform_15(%arg0: i32) -> (i32, i32) {
    %c0_i32 = arith.constant 0 : i32
    %c0_i32_0 = arith.constant 0 : i32
    %c0_i32_1 = arith.constant 0 : i32
    return %c0_i32, %c0_i32_0 : i32, i32
  }
  func.func @transform_16(%arg0: i32) -> (i32, i32) {
    %c0_i32 = arith.constant 0 : i32
    %c0_i32_0 = arith.constant 0 : i32
    %c0_i32_1 = arith.constant 0 : i32
    return %c0_i32, %c0_i32_0 : i32, i32
  }
  func.func @transform_17(%arg0: i32) -> (i32, i32) {
    %c0_i32 = arith.constant 0 : i32
    %c0_i32_0 = arith.constant 0 : i32
    %c0_i32_1 = arith.constant 0 : i32
    return %c0_i32, %c0_i32_0 : i32, i32
  }
  func.func @transform_18(%arg0: i32) -> (i32, i32) {
    %c0_i32 = arith.constant 0 : i32
    %c0_i32_0 = arith.constant 0 : i32
    %c0_i32_1 = arith.constant 0 : i32
    return %c0_i32, %c0_i32_0 : i32, i32
  }
  func.func @transform_19(%arg0: i32) -> (i32, i32) {
    %c0_i32 = arith.constant 0 : i32
    %c0_i32_0 = arith.constant 0 : i32
    %c0_i32_1 = arith.constant 0 : i32
    return %c0_i32, %c0_i32_0 : i32, i32
  }
  func.func @transform_20(%arg0: i32) -> (i32, i32) {
    %c0_i32 = arith.constant 0 : i32
    %c0_i32_0 = arith.constant 0 : i32
    %c0_i32_1 = arith.constant 0 : i32
    return %c0_i32, %c0_i32_0 : i32, i32
  }
  func.func @transform_21(%arg0: i32) -> (i32, i32) {
    %c0_i32 = arith.constant 0 : i32
    %c0_i32_0 = arith.constant 0 : i32
    %c0_i32_1 = arith.constant 0 : i32
    return %c0_i32, %c0_i32_0 : i32, i32
  }
  func.func @transform_22(%arg0: i32) -> (i32, i32) {
    %c0_i32 = arith.constant 0 : i32
    %c0_i32_0 = arith.constant 0 : i32
    %c0_i32_1 = arith.constant 0 : i32
    return %c0_i32, %c0_i32_0 : i32, i32
  }
}

</mosaic_0001>

<llo_original>
// kernel: _lambda_.1
$region0: #{_lambda_.1}
  #allocation0 [shape = 'u32[]', space=smem, size = 0x4, offset = 0x4, fixed_abs, tag = 'smem constant byte address 0x4 - core index']
  #allocation1 [shape = 'u32[72,128]{1,0:T(1,128)}', space=vmem, size = 0x9000, scoped, tag = 'internal scratch']
  #allocation2 [shape = 'f32[128,32]{1,0:T(8,128)}', space=vmem, size = 0x10000, scoped, tag = 'scratch operand']
  #allocation3 [shape = 'f32[128,32]{1,0:T(8,128)}', space=vmem, size = 0x10000, scoped, tag = 'scratch operand']
  #allocation4 [shape = 'f32[4,32]{1,0:T(4,128)}', space=vmem, size = 0x800, scoped, tag = 'scratch operand']
  #allocation5 [shape = 'f32[4,128]{1,0:T(4,128)}', space=vmem, size = 0x800, scoped, tag = 'scratch operand']
  #allocation6 [shape = 'f32[4,128]{1,0:T(4,128)}', space=vmem, size = 0x800, scoped, tag = 'scratch operand']
  #allocation7 [shape = 'f32[1,1]{1,0:T(1,128)}', space=vmem, size = 0x200, scoped, tag = 'scratch operand']
  %s0 = inlined_call_operand.vmem [shape: f32[128,32], index: 0, kind: input, shape index: {}]
  %s1 = inlined_call_operand.vmem [shape: f32[128,32], index: 1, kind: input, shape index: {}]
  %s2 = inlined_call_operand.vmem [shape: f32[4,128], index: 2, kind: input, shape index: {}]
  %s3 = inlined_call_operand.vmem [shape: f32[4,128], index: 3, kind: input, shape index: {}]
  %s4 = inlined_call_operand.vmem [shape: f32[128,128], index: 4, kind: input, shape index: {}]
  %s5 = inlined_call_operand.vmem [shape: f32[32,32], index: 5, kind: input, shape index: {}]
  %s6 = inlined_call_operand.vmem [shape: f32[32,32], index: 6, kind: input, shape index: {}]
  %s7 = inlined_call_operand.vmem [shape: f32[32,32], index: 7, kind: input, shape index: {}]
  %s8 = inlined_call_operand.vmem [shape: f32[32,32], index: 8, kind: input, shape index: {}]
  %s9 = inlined_call_operand.vmem [shape: f32[4,4], index: 9, kind: input, shape index: {}]
  %s10 = inlined_call_operand.vmem [shape: f32[32,96], index: 10, kind: input, shape index: {}]
  %s11 = inlined_call_operand.vmem [shape: f32[32,32], index: 11, kind: input, shape index: {}]
  %s12 = inlined_call_operand.vmem [shape: f32[32,64], index: 12, kind: input, shape index: {}]
  %s13 = inlined_call_operand.vmem [shape: f32[1,64], index: 13, kind: input, shape index: {}]
  %s14 = inlined_call_operand.vmem [shape: f32[64,32], index: 14, kind: input, shape index: {}]
  %s15 = inlined_call_operand.vmem [shape: f32[1,32], index: 15, kind: input, shape index: {}]
  %s16 = inlined_call_operand.vmem [shape: f32[4,32], index: 16, kind: input, shape index: {}]
  %s17 = inlined_call_operand.vmem [shape: f32[4,128], index: 17, kind: input, shape index: {}]
  %s18 = inlined_call_operand.vmem [shape: f32[4,128], index: 18, kind: input, shape index: {}]
  %s19 = inlined_call_operand.hbm [shape: f32[4,32], index: 19, kind: output, shape index: {0}]
  %s20 = inlined_call_operand.vmem [shape: f32[4,128], index: 20, kind: output, shape index: {1}]
  %s21 = inlined_call_operand.vmem [shape: f32[4,128], index: 21, kind: output, shape index: {2}]
  %s22 = inlined_call_operand.hbm [shape: f32[1,1], index: 22, kind: output, shape index: {3}]
  %23 = xla_tuple %s19, %s20, %s21, %s22
  %s24 = sld [smem:[#allocation0]]
  $region141: #{_lambda_.1} parent=0
    _
  %s26 = ssub.s32 1, %s24
  %s27 = scalar_select 0, %s26, %s24
  $region1: #{_lambda_.1} parent=0
    #allocation8 [shape = 'u8[2048]{0}', space=vmem, size = 0x800, scoped, tag = 'output window, operand 0, single buffered']
    #allocation9 [shape = 's32[2]{0}', space=sflag, size = 0x8, scoped, tag = 'scoped memory for _lambda_.1']
    #allocation10 [shape = 'u8[512]{0}', space=vmem, size = 0x400, scoped, tag = 'output window, operand 3, single buffered']
    #allocation11 [shape = 's32[1]{0}', space=sflag, size = 0x4, scoped, tag = 'scoped memory for _lambda_.1']
    %28 = vsyncpa [#allocation9], 0
    %29 = vsyncpa [#allocation11], 0
    loop: start=0, step=1, limit=4
    $region2: #{_lambda_.1} parent=1 // loop_pre_header
      _
    $region3: #{_lambda_.1} parent=1 // loop_header
      %s31 = sphi 0, %s35
      %p32 = scmp.ge.s32.totalorder %s31, 4
      %s39 = sphi 0, %s39
      %s41 = sphi 0, %s39
      %s42 = sphi 0, %s41
      %s56 = sphi 0, %s42
      %s60 = sphi 0, %s60
      %s62 = sphi 0, %s60
      %s63 = sphi 0, %s62
      %s77 = sphi 0, %s63
      %s81 = sphi 0, %s81
      %s83 = sphi 0, %s81
      %s84 = sphi 0, %s83
      %s98 = sphi 0, %s84
      %s102 = sphi 0, %s102
      %s104 = sphi 0, %s102
      %s105 = sphi 0, %s104
      %s119 = sphi 0, %s105
      %s123 = sphi 0, %s123
      %s125 = sphi 0, %s123
      %s126 = sphi 0, %s125
      %s140 = sphi 0, %s126
      %s144 = sphi 0, %s144
      %s146 = sphi 0, %s144
      %s147 = sphi 0, %s146
      %s161 = sphi 0, %s147
      %s165 = sphi 0, %s165
      %s167 = sphi 0, %s165
      %s168 = sphi 0, %s167
      %s182 = sphi 0, %s168
      %s186 = sphi 0, %s186
      %s188 = sphi 0, %s186
      %s189 = sphi 0, %s188
      %s203 = sphi 0, %s189
      %s207 = sphi 0, %s207
      %s209 = sphi 0, %s207
      %s210 = sphi 0, %s209
      %s224 = sphi 0, %s210
      %s228 = sphi 0, %s228
      %s230 = sphi 0, %s228
      %s231 = sphi 0, %s230
      %s245 = sphi 0, %s231
      %s249 = sphi 0, %s249
      %s251 = sphi 0, %s249
      %s252 = sphi 0, %s251
      %s266 = sphi 0, %s252
      %s270 = sphi 0, %s270
      %s272 = sphi 0, %s270
      %s273 = sphi 0, %s272
      %s287 = sphi 0, %s273
      %s291 = sphi 0, %s291
      %s293 = sphi 0, %s291
      %s294 = sphi 0, %s293
      %s308 = sphi 0, %s294
      %s312 = sphi 0, %s312
      %s314 = sphi 0, %s312
      %s315 = sphi 0, %s314
      %s329 = sphi 0, %s315
      %s333 = sphi 0, %s333
      %s335 = sphi 0, %s333
      %s336 = sphi 0, %s335
      %s350 = sphi 0, %s336
      %s354 = sphi 0, %s354
      %s356 = sphi 0, %s354
      %s357 = sphi 0, %s356
      %s371 = sphi 0, %s357
      %s375 = sphi 0, %s375
      %s377 = sphi 0, %s375
      %s378 = sphi 0, %s377
      %s392 = sphi 0, %s378
      %s396 = sphi 0, %s396
      %s398 = sphi 0, %s396
      %s399 = sphi 0, %s398
      %s413 = sphi 0, %s399
      %s417 = sphi 0, %s417
      %s419 = sphi 0, %s417
      %s420 = sphi 0, %s419
      %s434 = sphi 0, %s420
      %s438 = sphi 0, %s438
      %s440 = sphi 0, %s438
      %s441 = sphi 0, %s440
      %s455 = sphi 0, %s441
      %s459 = sphi 0, %s459
      %s461 = sphi 0, %s459
      %s462 = sphi 0, %s461
      %s476 = sphi 0, %s462
      %s480 = sphi 0, %s480
      %s482 = sphi 0, %s480
      %s483 = sphi 0, %s482
      %s497 = sphi 0, %s483
      %s501 = sphi 0, %s501
      %s503 = sphi 0, %s501
      %s504 = sphi 0, %s503
      %s518 = sphi 0, %s504
    $region4: #{_lambda_.1} parent=1 // loop_header_branch
      %34 = sbr.rel (%p32) target = $region8
    $region5: #{_lambda_.1} parent=1 // loop_body
      %s36 = ssub.s32 %s31, 1
      %s37 = ssub.s32 %s31, 2
      %s38 = sadd.s32 %s31, 1
      %s40 = sadd.s32 %s39, 1
      %p43 = scmp.eq.s32.totalorder %s31, 1
      %p44 = scmp.ne.s32.totalorder %s39, %s41
      %p45 = scmp.eq.s32.totalorder %s31, 0
      %p46 = por %p44, %p45
      %p47 = scmp.ne.s32.totalorder %s39, %s41
      %p48 = scmp.eq.s32.totalorder %s36, 1
      %p49 = por %p47, %p48
      %p50 = scmp.ne.s32.totalorder %s41, %s42
      %p51 = scmp.eq.s32.totalorder %s36, 0
      %p52 = por %p50, %p51
      %p53 = scmp.ne.s32.totalorder %s41, %s42
      %p54 = scmp.eq.s32.totalorder %s37, 1
      %p55 = por %p53, %p54
      %p57 = scmp.ne.s32.totalorder %s42, %s56
      %p58 = scmp.eq.s32.totalorder %s37, 0
      %p59 = por %p57, %p58
      %s61 = sadd.s32 %s60, 1
      %p64 = scmp.eq.s32.totalorder %s31, 1
      %p65 = scmp.ne.s32.totalorder %s60, %s62
      %p66 = scmp.eq.s32.totalorder %s31, 0
      %p67 = por %p65, %p66
      %p68 = scmp.ne.s32.totalorder %s60, %s62
      %p69 = scmp.eq.s32.totalorder %s36, 1
      %p70 = por %p68, %p69
      %p71 = scmp.ne.s32.totalorder %s62, %s63
      %p72 = scmp.eq.s32.totalorder %s36, 0
      %p73 = por %p71, %p72
      %p74 = scmp.ne.s32.totalorder %s62, %s63
      %p75 = scmp.eq.s32.totalorder %s37, 1
      %p76 = por %p74, %p75
      %p78 = scmp.ne.s32.totalorder %s63, %s77
      %p79 = scmp.eq.s32.totalorder %s37, 0
      %p80 = por %p78, %p79
      %s82 = sadd.s32 %s81, 1
      %p85 = scmp.eq.s32.totalorder %s31, 1
      %p86 = scmp.ne.s32.totalorder %s81, %s83
      %p87 = scmp.eq.s32.totalorder %s31, 0
      %p88 = por %p86, %p87
      %p89 = scmp.ne.s32.totalorder %s81, %s83
      %p90 = scmp.eq.s32.totalorder %s36, 1
      %p91 = por %p89, %p90
      %p92 = scmp.ne.s32.totalorder %s83, %s84
      %p93 = scmp.eq.s32.totalorder %s36, 0
      %p94 = por %p92, %p93
      %p95 = scmp.ne.s32.totalorder %s83, %s84
      %p96 = scmp.eq.s32.totalorder %s37, 1
      %p97 = por %p95, %p96
      %p99 = scmp.ne.s32.totalorder %s84, %s98
      %p100 = scmp.eq.s32.totalorder %s37, 0
      %p101 = por %p99, %p100
      %s103 = sadd.s32 %s102, 1
      %p106 = scmp.eq.s32.totalorder %s31, 1
      %p107 = scmp.ne.s32.totalorder %s102, %s104
      %p108 = scmp.eq.s32.totalorder %s31, 0
      %p109 = por %p107, %p108
      %p110 = scmp.ne.s32.totalorder %s102, %s104
      %p111 = scmp.eq.s32.totalorder %s36, 1
      %p112 = por %p110, %p111
      %p113 = scmp.ne.s32.totalorder %s104, %s105
      %p114 = scmp.eq.s32.totalorder %s36, 0
      %p115 = por %p113, %p114
      %p116 = scmp.ne.s32.totalorder %s104, %s105
      %p117 = scmp.eq.s32.totalorder %s37, 1
      %p118 = por %p116, %p117
      %p120 = scmp.ne.s32.totalorder %s105, %s119
      %p121 = scmp.eq.s32.totalorder %s37, 0
      %p122 = por %p120, %p121
      %s124 = sadd.s32 %s123, 1
      %p127 = scmp.eq.s32.totalorder %s31, 1
      %p128 = scmp.ne.s32.totalorder %s123, %s125
      %p129 = scmp.eq.s32.totalorder %s31, 0
      %p130 = por %p128, %p129
      %p131 = scmp.ne.s32.totalorder %s123, %s125
      %p132 = scmp.eq.s32.totalorder %s36, 1
      %p133 = por %p131, %p132
      %p134 = scmp.ne.s32.totalorder %s125, %s126
      %p135 = scmp.eq.s32.totalorder %s36, 0
      %p136 = por %p134, %p135
      %p137 = scmp.ne.s32.totalorder %s125, %s126
      %p138 = scmp.eq.s32.totalorder %s37, 1
      %p139 = por %p137, %p138
      %p141 = scmp.ne.s32.totalorder %s126, %s140
      %p142 = scmp.eq.s32.totalorder %s37, 0
      %p143 = por %p141, %p142
      %s145 = sadd.s32 %s144, 1
      %p148 = scmp.eq.s32.totalorder %s31, 1
      %p149 = scmp.ne.s32.totalorder %s144, %s146
      %p150 = scmp.eq.s32.totalorder %s31, 0
      %p151 = por %p149, %p150
      %p152 = scmp.ne.s32.totalorder %s144, %s146
      %p153 = scmp.eq.s32.totalorder %s36, 1
      %p154 = por %p152, %p153
      %p155 = scmp.ne.s32.totalorder %s146, %s147
      %p156 = scmp.eq.s32.totalorder %s36, 0
      %p157 = por %p155, %p156
      %p158 = scmp.ne.s32.totalorder %s146, %s147
      %p159 = scmp.eq.s32.totalorder %s37, 1
      %p160 = por %p158, %p159
      %p162 = scmp.ne.s32.totalorder %s147, %s161
      %p163 = scmp.eq.s32.totalorder %s37, 0
      %p164 = por %p162, %p163
      %s166 = sadd.s32 %s165, 1
      %p169 = scmp.eq.s32.totalorder %s31, 1
      %p170 = scmp.ne.s32.totalorder %s165, %s167
      %p171 = scmp.eq.s32.totalorder %s31, 0
      %p172 = por %p170, %p171
      %p173 = scmp.ne.s32.totalorder %s165, %s167
      %p174 = scmp.eq.s32.totalorder %s36, 1
      %p175 = por %p173, %p174
      %p176 = scmp.ne.s32.totalorder %s167, %s168
      %p177 = scmp.eq.s32.totalorder %s36, 0
      %p178 = por %p176, %p177
      %p179 = scmp.ne.s32.totalorder %s167, %s168
      %p180 = scmp.eq.s32.totalorder %s37, 1
      %p181 = por %p179, %p180
      %p183 = scmp.ne.s32.totalorder %s168, %s182
      %p184 = scmp.eq.s32.totalorder %s37, 0
      %p185 = por %p183, %p184
      %s187 = sadd.s32 %s186, 1
      %p190 = scmp.eq.s32.totalorder %s31, 1
      %p191 = scmp.ne.s32.totalorder %s186, %s188
      %p192 = scmp.eq.s32.totalorder %s31, 0
      %p193 = por %p191, %p192
      %p194 = scmp.ne.s32.totalorder %s186, %s188
      %p195 = scmp.eq.s32.totalorder %s36, 1
      %p196 = por %p194, %p195
      %p197 = scmp.ne.s32.totalorder %s188, %s189
      %p198 = scmp.eq.s32.totalorder %s36, 0
      %p199 = por %p197, %p198
      %p200 = scmp.ne.s32.totalorder %s188, %s189
      %p201 = scmp.eq.s32.totalorder %s37, 1
      %p202 = por %p200, %p201
      %p204 = scmp.ne.s32.totalorder %s189, %s203
      %p205 = scmp.eq.s32.totalorder %s37, 0
      %p206 = por %p204, %p205
      %s208 = sadd.s32 %s207, 1
      %p211 = scmp.eq.s32.totalorder %s31, 1
      %p212 = scmp.ne.s32.totalorder %s207, %s209
      %p213 = scmp.eq.s32.totalorder %s31, 0
      %p214 = por %p212, %p213
      %p215 = scmp.ne.s32.totalorder %s207, %s209
      %p216 = scmp.eq.s32.totalorder %s36, 1
      %p217 = por %p215, %p216
      %p218 = scmp.ne.s32.totalorder %s209, %s210
      %p219 = scmp.eq.s32.totalorder %s36, 0
      %p220 = por %p218, %p219
      %p221 = scmp.ne.s32.totalorder %s209, %s210
      %p222 = scmp.eq.s32.totalorder %s37, 1
      %p223 = por %p221, %p222
      %p225 = scmp.ne.s32.totalorder %s210, %s224
      %p226 = scmp.eq.s32.totalorder %s37, 0
      %p227 = por %p225, %p226
      %s229 = sadd.s32 %s228, 1
      %p232 = scmp.eq.s32.totalorder %s31, 1
      %p233 = scmp.ne.s32.totalorder %s228, %s230
      %p234 = scmp.eq.s32.totalorder %s31, 0
      %p235 = por %p233, %p234
      %p236 = scmp.ne.s32.totalorder %s228, %s230
      %p237 = scmp.eq.s32.totalorder %s36, 1
      %p238 = por %p236, %p237
      %p239 = scmp.ne.s32.totalorder %s230, %s231
      %p240 = scmp.eq.s32.totalorder %s36, 0
      %p241 = por %p239, %p240
      %p242 = scmp.ne.s32.totalorder %s230, %s231
      %p243 = scmp.eq.s32.totalorder %s37, 1
      %p244 = por %p242, %p243
      %p246 = scmp.ne.s32.totalorder %s231, %s245
      %p247 = scmp.eq.s32.totalorder %s37, 0
      %p248 = por %p246, %p247
      %s250 = sadd.s32 %s249, 1
      %p253 = scmp.eq.s32.totalorder %s31, 1
      %p254 = scmp.ne.s32.totalorder %s249, %s251
      %p255 = scmp.eq.s32.totalorder %s31, 0
      %p256 = por %p254, %p255
      %p257 = scmp.ne.s32.totalorder %s249, %s251
      %p258 = scmp.eq.s32.totalorder %s36, 1
      %p259 = por %p257, %p258
      %p260 = scmp.ne.s32.totalorder %s251, %s252
      %p261 = scmp.eq.s32.totalorder %s36, 0
      %p262 = por %p260, %p261
      %p263 = scmp.ne.s32.totalorder %s251, %s252
      %p264 = scmp.eq.s32.totalorder %s37, 1
      %p265 = por %p263, %p264
      %p267 = scmp.ne.s32.totalorder %s252, %s266
      %p268 = scmp.eq.s32.totalorder %s37, 0
      %p269 = por %p267, %p268
      %s271 = sadd.s32 %s270, 1
      %p274 = scmp.eq.s32.totalorder %s31, 1
      %p275 = scmp.ne.s32.totalorder %s270, %s272
      %p276 = scmp.eq.s32.totalorder %s31, 0
      %p277 = por %p275, %p276
      %p278 = scmp.ne.s32.totalorder %s270, %s272
      %p279 = scmp.eq.s32.totalorder %s36, 1
      %p280 = por %p278, %p279
      %p281 = scmp.ne.s32.totalorder %s272, %s273
      %p282 = scmp.eq.s32.totalorder %s36, 0
      %p283 = por %p281, %p282
      %p284 = scmp.ne.s32.totalorder %s272, %s273
      %p285 = scmp.eq.s32.totalorder %s37, 1
      %p286 = por %p284, %p285
      %p288 = scmp.ne.s32.totalorder %s273, %s287
      %p289 = scmp.eq.s32.totalorder %s37, 0
      %p290 = por %p288, %p289
      %s292 = sadd.s32 %s291, 1
      %p295 = scmp.eq.s32.totalorder %s31, 1
      %p296 = scmp.ne.s32.totalorder %s291, %s293
      %p297 = scmp.eq.s32.totalorder %s31, 0
      %p298 = por %p296, %p297
      %p299 = scmp.ne.s32.totalorder %s291, %s293
      %p300 = scmp.eq.s32.totalorder %s36, 1
      %p301 = por %p299, %p300
      %p302 = scmp.ne.s32.totalorder %s293, %s294
      %p303 = scmp.eq.s32.totalorder %s36, 0
      %p304 = por %p302, %p303
      %p305 = scmp.ne.s32.totalorder %s293, %s294
      %p306 = scmp.eq.s32.totalorder %s37, 1
      %p307 = por %p305, %p306
      %p309 = scmp.ne.s32.totalorder %s294, %s308
      %p310 = scmp.eq.s32.totalorder %s37, 0
      %p311 = por %p309, %p310
      %s313 = sadd.s32 %s312, 1
      %p316 = scmp.eq.s32.totalorder %s31, 1
      %p317 = scmp.ne.s32.totalorder %s312, %s314
      %p318 = scmp.eq.s32.totalorder %s31, 0
      %p319 = por %p317, %p318
      %p320 = scmp.ne.s32.totalorder %s312, %s314
      %p321 = scmp.eq.s32.totalorder %s36, 1
      %p322 = por %p320, %p321
      %p323 = scmp.ne.s32.totalorder %s314, %s315
      %p324 = scmp.eq.s32.totalorder %s36, 0
      %p325 = por %p323, %p324
      %p326 = scmp.ne.s32.totalorder %s314, %s315
      %p327 = scmp.eq.s32.totalorder %s37, 1
      %p328 = por %p326, %p327
      %p330 = scmp.ne.s32.totalorder %s315, %s329
      %p331 = scmp.eq.s32.totalorder %s37, 0
      %p332 = por %p330, %p331
      %s334 = sadd.s32 %s333, 1
      %p337 = scmp.eq.s32.totalorder %s31, 1
      %p338 = scmp.ne.s32.totalorder %s333, %s335
      %p339 = scmp.eq.s32.totalorder %s31, 0
      %p340 = por %p338, %p339
      %p341 = scmp.ne.s32.totalorder %s333, %s335
      %p342 = scmp.eq.s32.totalorder %s36, 1
      %p343 = por %p341, %p342
      %p344 = scmp.ne.s32.totalorder %s335, %s336
      %p345 = scmp.eq.s32.totalorder %s36, 0
      %p346 = por %p344, %p345
      %p347 = scmp.ne.s32.totalorder %s335, %s336
      %p348 = scmp.eq.s32.totalorder %s37, 1
      %p349 = por %p347, %p348
      %p351 = scmp.ne.s32.totalorder %s336, %s350
      %p352 = scmp.eq.s32.totalorder %s37, 0
      %p353 = por %p351, %p352
      %s355 = sadd.s32 %s354, 1
      %p358 = scmp.eq.s32.totalorder %s31, 1
      %p359 = scmp.ne.s32.totalorder %s354, %s356
      %p360 = scmp.eq.s32.totalorder %s31, 0
      %p361 = por %p359, %p360
      %p362 = scmp.ne.s32.totalorder %s354, %s356
      %p363 = scmp.eq.s32.totalorder %s36, 1
      %p364 = por %p362, %p363
      %p365 = scmp.ne.s32.totalorder %s356, %s357
      %p366 = scmp.eq.s32.totalorder %s36, 0
      %p367 = por %p365, %p366
      %p368 = scmp.ne.s32.totalorder %s356, %s357
      %p369 = scmp.eq.s32.totalorder %s37, 1
      %p370 = por %p368, %p369
      %p372 = scmp.ne.s32.totalorder %s357, %s371
      %p373 = scmp.eq.s32.totalorder %s37, 0
      %p374 = por %p372, %p373
      %s376 = sadd.s32 %s375, 1
      %p379 = scmp.eq.s32.totalorder %s31, 1
      %p380 = scmp.ne.s32.totalorder %s375, %s377
      %p381 = scmp.eq.s32.totalorder %s31, 0
      %p382 = por %p380, %p381
      %p383 = scmp.ne.s32.totalorder %s375, %s377
      %p384 = scmp.eq.s32.totalorder %s36, 1
      %p385 = por %p383, %p384
      %p386 = scmp.ne.s32.totalorder %s377, %s378
      %p387 = scmp.eq.s32.totalorder %s36, 0
      %p388 = por %p386, %p387
      %p389 = scmp.ne.s32.totalorder %s377, %s378
      %p390 = scmp.eq.s32.totalorder %s37, 1
      %p391 = por %p389, %p390
      %p393 = scmp.ne.s32.totalorder %s378, %s392
      %p394 = scmp.eq.s32.totalorder %s37, 0
      %p395 = por %p393, %p394
      %s397 = sadd.s32 %s396, 1
      %p400 = scmp.eq.s32.totalorder %s31, 1
      %p401 = scmp.ne.s32.totalorder %s396, %s398
      %p402 = scmp.eq.s32.totalorder %s31, 0
      %p403 = por %p401, %p402
      %p404 = scmp.ne.s32.totalorder %s396, %s398
      %p405 = scmp.eq.s32.totalorder %s36, 1
      %p406 = por %p404, %p405
      %p407 = scmp.ne.s32.totalorder %s398, %s399
      %p408 = scmp.eq.s32.totalorder %s36, 0
      %p409 = por %p407, %p408
      %p410 = scmp.ne.s32.totalorder %s398, %s399
      %p411 = scmp.eq.s32.totalorder %s37, 1
      %p412 = por %p410, %p411
      %p414 = scmp.ne.s32.totalorder %s399, %s413
      %p415 = scmp.eq.s32.totalorder %s37, 0
      %p416 = por %p414, %p415
      %s418 = sadd.s32 %s417, 1
      %p421 = scmp.eq.s32.totalorder %s31, 1
      %p422 = scmp.ne.s32.totalorder %s417, %s419
      %p423 = scmp.eq.s32.totalorder %s31, 0
      %p424 = por %p422, %p423
      %p425 = scmp.ne.s32.totalorder %s417, %s419
      %p426 = scmp.eq.s32.totalorder %s36, 1
      %p427 = por %p425, %p426
      %p428 = scmp.ne.s32.totalorder %s419, %s420
      %p429 = scmp.eq.s32.totalorder %s36, 0
      %p430 = por %p428, %p429
      %p431 = scmp.ne.s32.totalorder %s419, %s420
      %p432 = scmp.eq.s32.totalorder %s37, 1
      %p433 = por %p431, %p432
      %p435 = scmp.ne.s32.totalorder %s420, %s434
      %p436 = scmp.eq.s32.totalorder %s37, 0
      %p437 = por %p435, %p436
      %s439 = sadd.s32 %s438, 1
      %p442 = scmp.eq.s32.totalorder %s31, 1
      %p443 = scmp.ne.s32.totalorder %s438, %s440
      %p444 = scmp.eq.s32.totalorder %s31, 0
      %p445 = por %p443, %p444
      %p446 = scmp.ne.s32.totalorder %s438, %s440
      %p447 = scmp.eq.s32.totalorder %s36, 1
      %p448 = por %p446, %p447
      %p449 = scmp.ne.s32.totalorder %s440, %s441
      %p450 = scmp.eq.s32.totalorder %s36, 0
      %p451 = por %p449, %p450
      %p452 = scmp.ne.s32.totalorder %s440, %s441
      %p453 = scmp.eq.s32.totalorder %s37, 1
      %p454 = por %p452, %p453
      %p456 = scmp.ne.s32.totalorder %s441, %s455
      %p457 = scmp.eq.s32.totalorder %s37, 0
      %p458 = por %p456, %p457
      %s460 = sadd.s32 %s459, 1
      %p463 = scmp.eq.s32.totalorder %s31, 1
      %p464 = scmp.ne.s32.totalorder %s459, %s461
      %p465 = scmp.eq.s32.totalorder %s31, 0
      %p466 = por %p464, %p465
      %p467 = scmp.ne.s32.totalorder %s459, %s461
      %p468 = scmp.eq.s32.totalorder %s36, 1
      %p469 = por %p467, %p468
      %p470 = scmp.ne.s32.totalorder %s461, %s462
      %p471 = scmp.eq.s32.totalorder %s36, 0
      %p472 = por %p470, %p471
      %p473 = scmp.ne.s32.totalorder %s461, %s462
      %p474 = scmp.eq.s32.totalorder %s37, 1
      %p475 = por %p473, %p474
      %p477 = scmp.ne.s32.totalorder %s462, %s476
      %p478 = scmp.eq.s32.totalorder %s37, 0
      %p479 = por %p477, %p478
      %s481 = sadd.s32 %s480, 1
      %p484 = scmp.eq.s32.totalorder %s31, 1
      %p485 = scmp.ne.s32.totalorder %s480, %s482
      %p486 = scmp.eq.s32.totalorder %s31, 0
      %p487 = por %p485, %p486
      %p488 = scmp.ne.s32.totalorder %s480, %s482
      %p489 = scmp.eq.s32.totalorder %s36, 1
      %p490 = por %p488, %p489
      %p491 = scmp.ne.s32.totalorder %s482, %s483
      %p492 = scmp.eq.s32.totalorder %s36, 0
      %p493 = por %p491, %p492
      %p494 = scmp.ne.s32.totalorder %s482, %s483
      %p495 = scmp.eq.s32.totalorder %s37, 1
      %p496 = por %p494, %p495
      %p498 = scmp.ne.s32.totalorder %s483, %s497
      %p499 = scmp.eq.s32.totalorder %s37, 0
      %p500 = por %p498, %p499
      %s502 = sadd.s32 %s501, 1
      %p505 = scmp.eq.s32.totalorder %s31, 1
      %p506 = scmp.ne.s32.totalorder %s501, %s503
      %p507 = scmp.eq.s32.totalorder %s31, 0
      %p508 = por %p506, %p507
      %p509 = scmp.ne.s32.totalorder %s501, %s503
      %p510 = scmp.eq.s32.totalorder %s36, 1
      %p511 = por %p509, %p510
      %p512 = scmp.ne.s32.totalorder %s503, %s504
      %p513 = scmp.eq.s32.totalorder %s36, 0
      %p514 = por %p512, %p513
      %p515 = scmp.ne.s32.totalorder %s503, %s504
      %p516 = scmp.eq.s32.totalorder %s37, 1
      %p517 = por %p515, %p516
      %p519 = scmp.ne.s32.totalorder %s504, %s518
      %p520 = scmp.eq.s32.totalorder %s37, 0
      %p521 = por %p519, %p520
      %p522 = scmp.le.s32.totalorder 1, %s31
      %p523 = scmp.lt.s32.totalorder %s31, 3
      %p524 = pnand %p522, %p523
      %p525 = pneg %p524
      // Predicated region
      $region9: #{_lambda_.1} parent=5 // pred_check
        _
      $region10: #{_lambda_.1} parent=5 // pred_check_branch
        %527 = sbr.rel (%p524) target = $region12
      $region11: #{_lambda_.1} parent=5 // pred_region
        %s528 = ssub.s32 %s31, 1
        // Predicated region
        $region13: #{_lambda_.1} parent=11 // pred_check
          %p529 = pneg %p52
        $region14: #{_lambda_.1} parent=11 // pred_check_branch
          %531 = sbr.rel (%p529) target = $region16
        $region15: #{_lambda_.1} parent=11 // pred_region
          _
        $region16: #{_lambda_.1} parent=11 // pred_fallthru
          _
        // Predicated region
        $region17: #{_lambda_.1} parent=11 // pred_check
          %p532 = pneg %p73
        $region18: #{_lambda_.1} parent=11 // pred_check_branch
          %534 = sbr.rel (%p532) target = $region20
        $region19: #{_lambda_.1} parent=11 // pred_region
          _
        $region20: #{_lambda_.1} parent=11 // pred_fallthru
          _
        // Predicated region
        $region21: #{_lambda_.1} parent=11 // pred_check
          %p535 = pneg %p94
        $region22: #{_lambda_.1} parent=11 // pred_check_branch
          %537 = sbr.rel (%p535) target = $region24
        $region23: #{_lambda_.1} parent=11 // pred_region
          _
        $region24: #{_lambda_.1} parent=11 // pred_fallthru
          _
        // Predicated region
        $region25: #{_lambda_.1} parent=11 // pred_check
          %p538 = pneg %p115
        $region26: #{_lambda_.1} parent=11 // pred_check_branch
          %540 = sbr.rel (%p538) target = $region28
        $region27: #{_lambda_.1} parent=11 // pred_region
          _
        $region28: #{_lambda_.1} parent=11 // pred_fallthru
          _
        // Predicated region
        $region29: #{_lambda_.1} parent=11 // pred_check
          %p541 = pneg %p136
        $region30: #{_lambda_.1} parent=11 // pred_check_branch
          %543 = sbr.rel (%p541) target = $region32
        $region31: #{_lambda_.1} parent=11 // pred_region
          _
        $region32: #{_lambda_.1} parent=11 // pred_fallthru
          _
        // Predicated region
        $region33: #{_lambda_.1} parent=11 // pred_check
          %p544 = pneg %p157
        $region34: #{_lambda_.1} parent=11 // pred_check_branch
          %546 = sbr.rel (%p544) target = $region36
        $region35: #{_lambda_.1} parent=11 // pred_region
          _
        $region36: #{_lambda_.1} parent=11 // pred_fallthru
          _
        // Predicated region
        $region37: #{_lambda_.1} parent=11 // pred_check
          %p547 = pneg %p178
        $region38: #{_lambda_.1} parent=11 // pred_check_branch
          %549 = sbr.rel (%p547) target = $region40
        $region39: #{_lambda_.1} parent=11 // pred_region
          _
        $region40: #{_lambda_.1} parent=11 // pred_fallthru
          _
        // Predicated region
        $region41: #{_lambda_.1} parent=11 // pred_check
          %p550 = pneg %p199
        $region42: #{_lambda_.1} parent=11 // pred_check_branch
          %552 = sbr.rel (%p550) target = $region44
        $region43: #{_lambda_.1} parent=11 // pred_region
          _
        $region44: #{_lambda_.1} parent=11 // pred_fallthru
          _
        // Predicated region
        $region45: #{_lambda_.1} parent=11 // pred_check
          %p553 = pneg %p220
        $region46: #{_lambda_.1} parent=11 // pred_check_branch
          %555 = sbr.rel (%p553) target = $region48
        $region47: #{_lambda_.1} parent=11 // pred_region
          _
        $region48: #{_lambda_.1} parent=11 // pred_fallthru
          _
        // Predicated region
        $region49: #{_lambda_.1} parent=11 // pred_check
          %p556 = pneg %p241
        $region50: #{_lambda_.1} parent=11 // pred_check_branch
          %558 = sbr.rel (%p556) target = $region52
        $region51: #{_lambda_.1} parent=11 // pred_region
          _
        $region52: #{_lambda_.1} parent=11 // pred_fallthru
          _
        // Predicated region
        $region53: #{_lambda_.1} parent=11 // pred_check
          %p559 = pneg %p262
        $region54: #{_lambda_.1} parent=11 // pred_check_branch
          %561 = sbr.rel (%p559) target = $region56
        $region55: #{_lambda_.1} parent=11 // pred_region
          _
        $region56: #{_lambda_.1} parent=11 // pred_fallthru
          _
        // Predicated region
        $region57: #{_lambda_.1} parent=11 // pred_check
          %p562 = pneg %p283
        $region58: #{_lambda_.1} parent=11 // pred_check_branch
          %564 = sbr.rel (%p562) target = $region60
        $region59: #{_lambda_.1} parent=11 // pred_region
          _
        $region60: #{_lambda_.1} parent=11 // pred_fallthru
          _
        // Predicated region
        $region61: #{_lambda_.1} parent=11 // pred_check
          %p565 = pneg %p304
        $region62: #{_lambda_.1} parent=11 // pred_check_branch
          %567 = sbr.rel (%p565) target = $region64
        $region63: #{_lambda_.1} parent=11 // pred_region
          _
        $region64: #{_lambda_.1} parent=11 // pred_fallthru
          _
        // Predicated region
        $region65: #{_lambda_.1} parent=11 // pred_check
          %p568 = pneg %p325
        $region66: #{_lambda_.1} parent=11 // pred_check_branch
          %570 = sbr.rel (%p568) target = $region68
        $region67: #{_lambda_.1} parent=11 // pred_region
          _
        $region68: #{_lambda_.1} parent=11 // pred_fallthru
          _
        // Predicated region
        $region69: #{_lambda_.1} parent=11 // pred_check
          %p571 = pneg %p346
        $region70: #{_lambda_.1} parent=11 // pred_check_branch
          %573 = sbr.rel (%p571) target = $region72
        $region71: #{_lambda_.1} parent=11 // pred_region
          _
        $region72: #{_lambda_.1} parent=11 // pred_fallthru
          _
        // Predicated region
        $region73: #{_lambda_.1} parent=11 // pred_check
          %p574 = pneg %p367
        $region74: #{_lambda_.1} parent=11 // pred_check_branch
          %576 = sbr.rel (%p574) target = $region76
        $region75: #{_lambda_.1} parent=11 // pred_region
          _
        $region76: #{_lambda_.1} parent=11 // pred_fallthru
          _
        // Predicated region
        $region77: #{_lambda_.1} parent=11 // pred_check
          %p577 = pneg %p388
        $region78: #{_lambda_.1} parent=11 // pred_check_branch
          %579 = sbr.rel (%p577) target = $region80
        $region79: #{_lambda_.1} parent=11 // pred_region
          _
        $region80: #{_lambda_.1} parent=11 // pred_fallthru
          _
        // Predicated region
        $region81: #{_lambda_.1} parent=11 // pred_check
          %p580 = pneg %p409
        $region82: #{_lambda_.1} parent=11 // pred_check_branch
          %582 = sbr.rel (%p580) target = $region84
        $region83: #{_lambda_.1} parent=11 // pred_region
          _
        $region84: #{_lambda_.1} parent=11 // pred_fallthru
          _
        // Predicated region
        $region85: #{_lambda_.1} parent=11 // pred_check
          %p583 = pneg %p430
        $region86: #{_lambda_.1} parent=11 // pred_check_branch
          %585 = sbr.rel (%p583) target = $region88
        $region87: #{_lambda_.1} parent=11 // pred_region
          _
        $region88: #{_lambda_.1} parent=11 // pred_fallthru
          _
      $region12: #{_lambda_.1} parent=5 // pred_fallthru
        _
      %p586 = scmp.lt.s32.totalorder %s31, 2
      // Predicated region
      $region89: #{_lambda_.1} parent=5 // pred_check
        %p587 = pneg %p586
      $region90: #{_lambda_.1} parent=5 // pred_check_branch
        %589 = sbr.rel (%p587) target = $region92
      $region91: #{_lambda_.1} parent=5 // pred_region
        _
      $region92: #{_lambda_.1} parent=5 // pred_fallthru
        _
      %p590 = scmp.le.s32.totalorder 1, %s31
      %p591 = scmp.lt.s32.totalorder %s31, 3
      %p592 = pnand %p590, %p591
      %p593 = pneg %p592
      // Predicated region
      $region93: #{_lambda_.1} parent=5 // pred_check
        _
      $region94: #{_lambda_.1} parent=5 // pred_check_branch
        %595 = sbr.rel (%p592) target = $region96
      $region95: #{_lambda_.1} parent=5 // pred_region
        %s596 = ssub.s32 %s31, 1
        %p597 = pneg %p52
        %p598 = pneg %p49
        %p599 = pneg %p73
        %p600 = pneg %p70
        %p601 = pneg %p94
        %p602 = pneg %p91
        %p603 = pneg %p115
        %p604 = pneg %p112
        %p605 = pneg %p136
        %p606 = pneg %p133
        %p607 = pneg %p157
        %p608 = pneg %p154
        %p609 = pneg %p178
        %p610 = pneg %p175
        %p611 = pneg %p199
        %p612 = pneg %p196
        %p613 = pneg %p220
        %p614 = pneg %p217
        %p615 = pneg %p241
        %p616 = pneg %p238
        %p617 = pneg %p262
        %p618 = pneg %p259
        %p619 = pneg %p283
        %p620 = pneg %p280
        %p621 = pneg %p304
        %p622 = pneg %p301
        %p623 = pneg %p325
        %p624 = pneg %p322
        %p625 = pneg %p346
        %p626 = pneg %p343
        %p627 = pneg %p367
        %p628 = pneg %p364
        %p629 = pneg %p388
        %p630 = pneg %p385
        %p631 = pneg %p409
        %p632 = pneg %p406
        %p633 = pneg %p430
        %p634 = pneg %p427
        %p635 = pneg %p451
        %p636 = pneg %p448
        %p637 = pneg %p472
        %p638 = pneg %p469
        %p639 = pneg %p493
        %p640 = pneg %p490
        %p641 = pneg %p514
        %p642 = pneg %p511
        %p643 = scmp.eq.s32.totalorder %s36, 0
        // Predicated region
        $region97: #{_lambda_.1} parent=95 // pred_check
          %p644 = pneg %p643
        $region98: #{_lambda_.1} parent=95 // pred_check_branch
          %646 = sbr.rel (%p644) target = $region100
        $region99: #{_lambda_.1} parent=95 // pred_region
          %v647 = vld [vmem:[%s1] sm:$0xff]
          %v648 = vld [vmem:[%s1 + $0x8] sm:$0xff]
          %v649 = vld [vmem:[%s1 + $0x10] sm:$0xff]
          %v650 = vld [vmem:[%s1 + $0x18] sm:$0xff]
          %v651 = vld [vmem:[%s1 + $0x20] sm:$0xff]
          %v652 = vld [vmem:[%s1 + $0x28] sm:$0xff]
          %v653 = vld [vmem:[%s1 + $0x30] sm:$0xff]
          %v654 = vld [vmem:[%s1 + $0x38] sm:$0xff]
          %v655 = vld [vmem:[%s1 + $0x40] sm:$0xff]
          %v656 = vld [vmem:[%s1 + $0x48] sm:$0xff]
          %v657 = vld [vmem:[%s1 + $0x50] sm:$0xff]
          %v658 = vld [vmem:[%s1 + $0x58] sm:$0xff]
          %v659 = vld [vmem:[%s1 + $0x60] sm:$0xff]
          %v660 = vld [vmem:[%s1 + $0x68] sm:$0xff]
          %v661 = vld [vmem:[%s1 + $0x70] sm:$0xff]
          %v662 = vld [vmem:[%s1 + $0x78] sm:$0xff]
          %v663 = vld [vmem:[%s6] sm:$0xff]
          %v664 = vld [vmem:[%s6 + $0x8] sm:$0xff]
          %v665 = vld [vmem:[%s6 + $0x10] sm:$0xff]
          %v666 = vld [vmem:[%s6 + $0x18] sm:$0xff]
          %vm667 = vcmask 261120
          %v669 = vsel %vm667, %v647, 0
          %v672 = vsel %vm667, %v648, 0
          %v675 = vsel %vm667, %v649, 0
          %v678 = vsel %vm667, %v650, 0
          %v681 = vsel %vm667, %v651, 0
          %v684 = vsel %vm667, %v652, 0
          %v687 = vsel %vm667, %v653, 0
          %v690 = vsel %vm667, %v654, 0
          %v693 = vsel %vm667, %v655, 0
          %v696 = vsel %vm667, %v656, 0
          %v699 = vsel %vm667, %v657, 0
          %v702 = vsel %vm667, %v658, 0
          %v705 = vsel %vm667, %v659, 0
          %v708 = vsel %vm667, %v660, 0
          %v711 = vsel %vm667, %v661, 0
          %v714 = vsel %vm667, %v662, 0
          %716 = vmatpush.msra.mxu0 0.0
          %717 = vmatpush.msra.mxu0 0.0
          %718 = vmatpush.msra.mxu0 0.0
          %719 = vmatpush.msra.mxu0 0.0
          %720 = vmatpush.msra.mxu0 0.0
          %721 = vmatpush.msra.mxu0 0.0
          %722 = vmatpush.msra.mxu0 0.0
          %723 = vmatpush.msra.mxu0 0.0
          %724 = vmatpush.msra.mxu0 0.0
          %725 = vmatpush.msra.mxu0 0.0
          %726 = vmatpush.msra.mxu0 0.0
          %727 = vmatpush.msra.mxu0 0.0
          %728 = vmatpush.msra.mxu0 %v666
          %729 = vmatpush.msra.mxu0 %v665
          %730 = vmatpush.msra.mxu0 %v664
          %731 = vmatpush.msra.mxu0 %v663
          %732 = vmatmul.f32.gmra.mxu0 %v669
          %v733 = vpop.f32.mrf.mxu0
          %v734 = vadd.f32 0.0, %v733
          %735 = vmatmul.f32.gmra.mxu0 %v672
          %v736 = vpop.f32.mrf.mxu0
          %v737 = vadd.f32 0.0, %v736
          %738 = vmatmul.f32.gmra.mxu0 %v675
          %v739 = vpop.f32.mrf.mxu0
          %v740 = vadd.f32 0.0, %v739
          %741 = vmatmul.f32.gmra.mxu0 %v678
          %v742 = vpop.f32.mrf.mxu0
          %v743 = vadd.f32 0.0, %v742
          %744 = vmatmul.f32.gmra.mxu0 %v681
          %v745 = vpop.f32.mrf.mxu0
          %v746 = vadd.f32 0.0, %v745
          %747 = vmatmul.f32.gmra.mxu0 %v684
          %v748 = vpop.f32.mrf.mxu0
          %v749 = vadd.f32 0.0, %v748
          %750 = vmatmul.f32.gmra.mxu0 %v687
          %v751 = vpop.f32.mrf.mxu0
          %v752 = vadd.f32 0.0, %v751
          %753 = vmatmul.f32.gmra.mxu0 %v690
          %v754 = vpop.f32.mrf.mxu0
          %v755 = vadd.f32 0.0, %v754
          %756 = vmatmul.f32.gmra.mxu0 %v693
          %v757 = vpop.f32.mrf.mxu0
          %v758 = vadd.f32 0.0, %v757
          %759 = vmatmul.f32.gmra.mxu0 %v696
          %v760 = vpop.f32.mrf.mxu0
          %v761 = vadd.f32 0.0, %v760
          %762 = vmatmul.f32.gmra.mxu0 %v699
          %v763 = vpop.f32.mrf.mxu0
          %v764 = vadd.f32 0.0, %v763
          %765 = vmatmul.f32.gmra.mxu0 %v702
          %v766 = vpop.f32.mrf.mxu0
          %v767 = vadd.f32 0.0, %v766
          %768 = vmatmul.f32.gmra.mxu0 %v705
          %v769 = vpop.f32.mrf.mxu0
          %v770 = vadd.f32 0.0, %v769
          %771 = vmatmul.f32.gmra.mxu0 %v708
          %v772 = vpop.f32.mrf.mxu0
          %v773 = vadd.f32 0.0, %v772
          %774 = vmatmul.f32.gmra.mxu0 %v711
          %v775 = vpop.f32.mrf.mxu0
          %v776 = vadd.f32 0.0, %v775
          %777 = vmatmul.f32.gmra.mxu0 %v714
          %v778 = vpop.f32.mrf.mxu0
          %v779 = vadd.f32 0.0, %v778
          %780 = vdwg.mxu0
          %781 = vst.msk [vmem:[#allocation2] sm:$0xff] %vm667, %v734
          %782 = vst.msk [vmem:[#allocation2 + $0x8] sm:$0xff] %vm667, %v737
          %783 = vst.msk [vmem:[#allocation2 + $0x10] sm:$0xff] %vm667, %v740
          %784 = vst.msk [vmem:[#allocation2 + $0x18] sm:$0xff] %vm667, %v743
          %785 = vst.msk [vmem:[#allocation2 + $0x20] sm:$0xff] %vm667, %v746
          %786 = vst.msk [vmem:[#allocation2 + $0x28] sm:$0xff] %vm667, %v749
          %787 = vst.msk [vmem:[#allocation2 + $0x30] sm:$0xff] %vm667, %v752
          %788 = vst.msk [vmem:[#allocation2 + $0x38] sm:$0xff] %vm667, %v755
          %789 = vst.msk [vmem:[#allocation2 + $0x40] sm:$0xff] %vm667, %v758
          %790 = vst.msk [vmem:[#allocation2 + $0x48] sm:$0xff] %vm667, %v761
          %791 = vst.msk [vmem:[#allocation2 + $0x50] sm:$0xff] %vm667, %v764
          %792 = vst.msk [vmem:[#allocation2 + $0x58] sm:$0xff] %vm667, %v767
          %793 = vst.msk [vmem:[#allocation2 + $0x60] sm:$0xff] %vm667, %v770
          %794 = vst.msk [vmem:[#allocation2 + $0x68] sm:$0xff] %vm667, %v773
          %795 = vst.msk [vmem:[#allocation2 + $0x70] sm:$0xff] %vm667, %v776
          %796 = vst.msk [vmem:[#allocation2 + $0x78] sm:$0xff] %vm667, %v779
          %v797 = vld [vmem:[%s0] sm:$0xff]
          %v798 = vld [vmem:[%s0 + $0x8] sm:$0xff]
          %v799 = vld [vmem:[%s0 + $0x10] sm:$0xff]
          %v800 = vld [vmem:[%s0 + $0x18] sm:$0xff]
          %v801 = vld [vmem:[%s0 + $0x20] sm:$0xff]
          %v802 = vld [vmem:[%s0 + $0x28] sm:$0xff]
          %v803 = vld [vmem:[%s0 + $0x30] sm:$0xff]
          %v804 = vld [vmem:[%s0 + $0x38] sm:$0xff]
          %v805 = vld [vmem:[%s0 + $0x40] sm:$0xff]
          %v806 = vld [vmem:[%s0 + $0x48] sm:$0xff]
          %v807 = vld [vmem:[%s0 + $0x50] sm:$0xff]
          %v808 = vld [vmem:[%s0 + $0x58] sm:$0xff]
          %v809 = vld [vmem:[%s0 + $0x60] sm:$0xff]
          %v810 = vld [vmem:[%s0 + $0x68] sm:$0xff]
          %v811 = vld [vmem:[%s0 + $0x70] sm:$0xff]
          %v812 = vld [vmem:[%s0 + $0x78] sm:$0xff]
          %v813 = vld [vmem:[%s7] sm:$0xff]
          %v814 = vld [vmem:[%s7 + $0x8] sm:$0xff]
          %v815 = vld [vmem:[%s7 + $0x10] sm:$0xff]
          %v816 = vld [vmem:[%s7 + $0x18] sm:$0xff]
          %v818 = vsel %vm667, %v797, 0
          %v821 = vsel %vm667, %v798, 0
          %v824 = vsel %vm667, %v799, 0
          %v827 = vsel %vm667, %v800, 0
          %v830 = vsel %vm667, %v801, 0
          %v833 = vsel %vm667, %v802, 0
          %v836 = vsel %vm667, %v803, 0
          %v839 = vsel %vm667, %v804, 0
          %v842 = vsel %vm667, %v805, 0
          %v845 = vsel %vm667, %v806, 0
          %v848 = vsel %vm667, %v807, 0
          %v851 = vsel %vm667, %v808, 0
          %v854 = vsel %vm667, %v809, 0
          %v857 = vsel %vm667, %v810, 0
          %v860 = vsel %vm667, %v811, 0
          %v863 = vsel %vm667, %v812, 0
          %865 = vmatpush.msra.mxu0 0.0
          %866 = vmatpush.msra.mxu0 0.0
          %867 = vmatpush.msra.mxu0 0.0
          %868 = vmatpush.msra.mxu0 0.0
          %869 = vmatpush.msra.mxu0 0.0
          %870 = vmatpush.msra.mxu0 0.0
          %871 = vmatpush.msra.mxu0 0.0
          %872 = vmatpush.msra.mxu0 0.0
          %873 = vmatpush.msra.mxu0 0.0
          %874 = vmatpush.msra.mxu0 0.0
          %875 = vmatpush.msra.mxu0 0.0
          %876 = vmatpush.msra.mxu0 0.0
          %877 = vmatpush.msra.mxu0 %v816
          %878 = vmatpush.msra.mxu0 %v815
          %879 = vmatpush.msra.mxu0 %v814
          %880 = vmatpush.msra.mxu0 %v813
          %881 = vmatmul.f32.gmra.mxu0 %v818
          %v882 = vpop.f32.mrf.mxu0
          %v883 = vadd.f32 0.0, %v882
          %884 = vmatmul.f32.gmra.mxu0 %v821
          %v885 = vpop.f32.mrf.mxu0
          %v886 = vadd.f32 0.0, %v885
          %887 = vmatmul.f32.gmra.mxu0 %v824
          %v888 = vpop.f32.mrf.mxu0
          %v889 = vadd.f32 0.0, %v888
          %890 = vmatmul.f32.gmra.mxu0 %v827
          %v891 = vpop.f32.mrf.mxu0
          %v892 = vadd.f32 0.0, %v891
          %893 = vmatmul.f32.gmra.mxu0 %v830
          %v894 = vpop.f32.mrf.mxu0
          %v895 = vadd.f32 0.0, %v894
          %896 = vmatmul.f32.gmra.mxu0 %v833
          %v897 = vpop.f32.mrf.mxu0
          %v898 = vadd.f32 0.0, %v897
          %899 = vmatmul.f32.gmra.mxu0 %v836
          %v900 = vpop.f32.mrf.mxu0
          %v901 = vadd.f32 0.0, %v900
          %902 = vmatmul.f32.gmra.mxu0 %v839
          %v903 = vpop.f32.mrf.mxu0
          %v904 = vadd.f32 0.0, %v903
          %905 = vmatmul.f32.gmra.mxu0 %v842
          %v906 = vpop.f32.mrf.mxu0
          %v907 = vadd.f32 0.0, %v906
          %908 = vmatmul.f32.gmra.mxu0 %v845
          %v909 = vpop.f32.mrf.mxu0
          %v910 = vadd.f32 0.0, %v909
          %911 = vmatmul.f32.gmra.mxu0 %v848
          %v912 = vpop.f32.mrf.mxu0
          %v913 = vadd.f32 0.0, %v912
          %914 = vmatmul.f32.gmra.mxu0 %v851
          %v915 = vpop.f32.mrf.mxu0
          %v916 = vadd.f32 0.0, %v915
          %917 = vmatmul.f32.gmra.mxu0 %v854
          %v918 = vpop.f32.mrf.mxu0
          %v919 = vadd.f32 0.0, %v918
          %920 = vmatmul.f32.gmra.mxu0 %v857
          %v921 = vpop.f32.mrf.mxu0
          %v922 = vadd.f32 0.0, %v921
          %923 = vmatmul.f32.gmra.mxu0 %v860
          %v924 = vpop.f32.mrf.mxu0
          %v925 = vadd.f32 0.0, %v924
          %926 = vmatmul.f32.gmra.mxu0 %v863
          %v927 = vpop.f32.mrf.mxu0
          %v928 = vadd.f32 0.0, %v927
          %929 = vdwg.mxu0
          %930 = vst.msk [vmem:[#allocation3] sm:$0xff] %vm667, %v883
          %931 = vst.msk [vmem:[#allocation3 + $0x8] sm:$0xff] %vm667, %v886
          %932 = vst.msk [vmem:[#allocation3 + $0x10] sm:$0xff] %vm667, %v889
          %933 = vst.msk [vmem:[#allocation3 + $0x18] sm:$0xff] %vm667, %v892
          %934 = vst.msk [vmem:[#allocation3 + $0x20] sm:$0xff] %vm667, %v895
          %935 = vst.msk [vmem:[#allocation3 + $0x28] sm:$0xff] %vm667, %v898
          %936 = vst.msk [vmem:[#allocation3 + $0x30] sm:$0xff] %vm667, %v901
          %937 = vst.msk [vmem:[#allocation3 + $0x38] sm:$0xff] %vm667, %v904
          %938 = vst.msk [vmem:[#allocation3 + $0x40] sm:$0xff] %vm667, %v907
          %939 = vst.msk [vmem:[#allocation3 + $0x48] sm:$0xff] %vm667, %v910
          %940 = vst.msk [vmem:[#allocation3 + $0x50] sm:$0xff] %vm667, %v913
          %941 = vst.msk [vmem:[#allocation3 + $0x58] sm:$0xff] %vm667, %v916
          %942 = vst.msk [vmem:[#allocation3 + $0x60] sm:$0xff] %vm667, %v919
          %943 = vst.msk [vmem:[#allocation3 + $0x68] sm:$0xff] %vm667, %v922
          %944 = vst.msk [vmem:[#allocation3 + $0x70] sm:$0xff] %vm667, %v925
          %945 = vst.msk [vmem:[#allocation3 + $0x78] sm:$0xff] %vm667, %v928
          %v946 = vld [vmem:[%s16] sm:$0xf]
          %vm947 = vcmask 257024
          %948 = vst.msk [vmem:[#allocation4] sm:$0xf] %vm947, %v946
          %v949 = vld [vmem:[%s17] sm:$0xf]
          %950 = vst [vmem:[#allocation5] sm:$0xf] %v949
          %v951 = vld [vmem:[%s18] sm:$0xf]
          %952 = vst [vmem:[#allocation6] sm:$0xf] %v951
          %vm953 = vcmask 0
          %954 = vst.msk [vmem:[#allocation7] sm:$0x1] %vm953, 0.0
        $region100: #{_lambda_.1} parent=95 // pred_fallthru
          _
        %v955 = vld [vmem:[#allocation4] sm:$0xf]
        %v956 = vld [vmem:[#allocation5] sm:$0xf]
        %v957 = vld [vmem:[#allocation6] sm:$0xf]
        %v958 = vld [vmem:[%s5] sm:$0xff]
        %v959 = vld [vmem:[%s5 + $0x8] sm:$0xff]
        %v960 = vld [vmem:[%s5 + $0x10] sm:$0xff]
        %v961 = vld [vmem:[%s5 + $0x18] sm:$0xff]
        %vm962 = vcmask 261120
        %v964 = vsel %vm962, %v955, 0
        %966 = vmatpush.msra.mxu0 0.0
        %967 = vmatpush.msra.mxu0 0.0
        %968 = vmatpush.msra.mxu0 0.0
        %969 = vmatpush.msra.mxu0 0.0
        %970 = vmatpush.msra.mxu0 0.0
        %971 = vmatpush.msra.mxu0 0.0
        %972 = vmatpush.msra.mxu0 0.0
        %973 = vmatpush.msra.mxu0 0.0
        %974 = vmatpush.msra.mxu0 0.0
        %975 = vmatpush.msra.mxu0 0.0
        %976 = vmatpush.msra.mxu0 0.0
        %977 = vmatpush.msra.mxu0 0.0
        %978 = vmatpush.msra.mxu0 %v961
        %979 = vmatpush.msra.mxu0 %v960
        %980 = vmatpush.msra.mxu0 %v959
        %981 = vmatpush.msra.mxu0 %v958
        %982 = vmatmul.f32.gmra.mxu0 %v964
        %v983 = vpop.f32.mrf.mxu0
        %v984 = vadd.f32 0.0, %v983
        %985 = vdwg.mxu0
        %v986 = vmul.f32 %v984, 0.17677669
        %v987 = vld [vmem:[#allocation2] sm:$0xff]
        %v988 = vld [vmem:[#allocation2 + $0x8] sm:$0xff]
        %v989 = vld [vmem:[#allocation2 + $0x10] sm:$0xff]
        %v990 = vld [vmem:[#allocation2 + $0x18] sm:$0xff]
        %v991 = vld [vmem:[#allocation2 + $0x20] sm:$0xff]
        %v992 = vld [vmem:[#allocation2 + $0x28] sm:$0xff]
        %v993 = vld [vmem:[#allocation2 + $0x30] sm:$0xff]
        %v994 = vld [vmem:[#allocation2 + $0x38] sm:$0xff]
        %v995 = vld [vmem:[#allocation2 + $0x40] sm:$0xff]
        %v996 = vld [vmem:[#allocation2 + $0x48] sm:$0xff]
        %v997 = vld [vmem:[#allocation2 + $0x50] sm:$0xff]
        %v998 = vld [vmem:[#allocation2 + $0x58] sm:$0xff]
        %v999 = vld [vmem:[#allocation2 + $0x60] sm:$0xff]
        %v1000 = vld [vmem:[#allocation2 + $0x68] sm:$0xff]
        %v1001 = vld [vmem:[#allocation2 + $0x70] sm:$0xff]
        %v1002 = vld [vmem:[#allocation2 + $0x78] sm:$0xff]
        %v1003 = vld [vmem:[%s2] sm:$0xf]
        %v1005 = vsel %vm962, %v986, 0
        %v1008 = vsel %vm962, %v987, 0
        %v1011 = vsel %vm962, %v988, 0
        %v1014 = vsel %vm962, %v989, 0
        %v1017 = vsel %vm962, %v990, 0
        %v1020 = vsel %vm962, %v991, 0
        %v1023 = vsel %vm962, %v992, 0
        %v1026 = vsel %vm962, %v993, 0
        %v1029 = vsel %vm962, %v994, 0
        %v1032 = vsel %vm962, %v995, 0
        %v1035 = vsel %vm962, %v996, 0
        %v1038 = vsel %vm962, %v997, 0
        %v1041 = vsel %vm962, %v998, 0
        %v1044 = vsel %vm962, %v999, 0
        %v1047 = vsel %vm962, %v1000, 0
        %v1050 = vsel %vm962, %v1001, 0
        %v1053 = vsel %vm962, %v1002, 0
        %1055 = vmatpush.xpose.msra.mxu0 %v1053
        %1056 = vmatpush.xpose.msra.mxu0 %v1050
        %1057 = vmatpush.xpose.msra.mxu0 %v1047
        %1058 = vmatpush.xpose.msra.mxu0 %v1044
        %1059 = vmatpush.xpose.msra.mxu0 %v1041
        %1060 = vmatpush.xpose.msra.mxu0 %v1038
        %1061 = vmatpush.xpose.msra.mxu0 %v1035
        %1062 = vmatpush.xpose.msra.mxu0 %v1032
        %1063 = vmatpush.xpose.msra.mxu0 %v1029
        %1064 = vmatpush.xpose.msra.mxu0 %v1026
        %1065 = vmatpush.xpose.msra.mxu0 %v1023
        %1066 = vmatpush.xpose.msra.mxu0 %v1020
        %1067 = vmatpush.xpose.msra.mxu0 %v1017
        %1068 = vmatpush.xpose.msra.mxu0 %v1014
        %1069 = vmatpush.xpose.msra.mxu0 %v1011
        %1070 = vmatpush.xpose.msra.mxu0 %v1008
        %1071 = vmatmul.f32.gmra.mxu0 %v1005
        %v1072 = vpop.f32.mrf.mxu0
        %v1073 = vadd.f32 %v1003, %v1072
        %1074 = vdwg.mxu0
        %vm1075 = vcmask 1043456
        %v1076 = vsel %vm1075, %v1073, -inf
        %1077 = vmax.xlane.f32.xlu0 %v1076
        %v1078 = vpop.xlane.xlu0 %1077
        %v1079 = vsub.f32 %v1073, %v1078
        %v1080 = vmul.f32 %v1079, 1.442695
        %v1081 = vpow.pop %v1080
        %v1082 = vsel %vm1075, %v1081, 0.0
        %1083 = vadd.xlane.f32.xlu0 %v1082
        %v1084 = vpop.xlane.xlu0 %1083
        %v1085 = vrcp.pop %v1084
        %v1086 = vmul.f32 %v1081, %v1085
        %v1087 = vld [vmem:[#allocation3] sm:$0xff]
        %v1088 = vld [vmem:[#allocation3 + $0x8] sm:$0xff]
        %v1089 = vld [vmem:[#allocation3 + $0x10] sm:$0xff]
        %v1090 = vld [vmem:[#allocation3 + $0x18] sm:$0xff]
        %v1091 = vld [vmem:[#allocation3 + $0x20] sm:$0xff]
        %v1092 = vld [vmem:[#allocation3 + $0x28] sm:$0xff]
        %v1093 = vld [vmem:[#allocation3 + $0x30] sm:$0xff]
        %v1094 = vld [vmem:[#allocation3 + $0x38] sm:$0xff]
        %v1095 = vld [vmem:[#allocation3 + $0x40] sm:$0xff]
        %v1096 = vld [vmem:[#allocation3 + $0x48] sm:$0xff]
        %v1097 = vld [vmem:[#allocation3 + $0x50] sm:$0xff]
        %v1098 = vld [vmem:[#allocation3 + $0x58] sm:$0xff]
        %v1099 = vld [vmem:[#allocation3 + $0x60] sm:$0xff]
        %v1100 = vld [vmem:[#allocation3 + $0x68] sm:$0xff]
        %v1101 = vld [vmem:[#allocation3 + $0x70] sm:$0xff]
        %v1102 = vld [vmem:[#allocation3 + $0x78] sm:$0xff]
        %1103 = vmatpush.msra.mxu0 %v1102
        %1104 = vmatpush.msra.mxu0 %v1101
        %1105 = vmatpush.msra.mxu0 %v1100
        %1106 = vmatpush.msra.mxu0 %v1099
        %1107 = vmatpush.msra.mxu0 %v1098
        %1108 = vmatpush.msra.mxu0 %v1097
        %1109 = vmatpush.msra.mxu0 %v1096
        %1110 = vmatpush.msra.mxu0 %v1095
        %1111 = vmatpush.msra.mxu0 %v1094
        %1112 = vmatpush.msra.mxu0 %v1093
        %1113 = vmatpush.msra.mxu0 %v1092
        %1114 = vmatpush.msra.mxu0 %v1091
        %1115 = vmatpush.msra.mxu0 %v1090
        %1116 = vmatpush.msra.mxu0 %v1089
        %1117 = vmatpush.msra.mxu0 %v1088
        %1118 = vmatpush.msra.mxu0 %v1087
        %1119 = vmatmul.f32.gmra.mxu0 %v1086
        %v1120 = vpop.f32.mrf.mxu0
        %v1121 = vadd.f32 0.0, %v1120
        %1122 = vdwg.mxu0
        %v1123 = vld [vmem:[%s8] sm:$0xff]
        %v1124 = vld [vmem:[%s8 + $0x8] sm:$0xff]
        %v1125 = vld [vmem:[%s8 + $0x10] sm:$0xff]
        %v1126 = vld [vmem:[%s8 + $0x18] sm:$0xff]
        %v1128 = vsel %vm962, %v1121, 0
        %1130 = vmatpush.msra.mxu0 0.0
        %1131 = vmatpush.msra.mxu0 0.0
        %1132 = vmatpush.msra.mxu0 0.0
        %1133 = vmatpush.msra.mxu0 0.0
        %1134 = vmatpush.msra.mxu0 0.0
        %1135 = vmatpush.msra.mxu0 0.0
        %1136 = vmatpush.msra.mxu0 0.0
        %1137 = vmatpush.msra.mxu0 0.0
        %1138 = vmatpush.msra.mxu0 0.0
        %1139 = vmatpush.msra.mxu0 0.0
        %1140 = vmatpush.msra.mxu0 0.0
        %1141 = vmatpush.msra.mxu0 0.0
        %1142 = vmatpush.msra.mxu0 %v1126
        %1143 = vmatpush.msra.mxu0 %v1125
        %1144 = vmatpush.msra.mxu0 %v1124
        %1145 = vmatpush.msra.mxu0 %v1123
        %1146 = vmatmul.f32.gmra.mxu0 %v1128
        %v1147 = vpop.f32.mrf.mxu0
        %v1148 = vadd.f32 0.0, %v1147
        %1149 = vdwg.mxu0
        %v1150 = vadd.f32 %v955, %v1148
        %v1151 = vld [vmem:[%s3] sm:$0xf]
        %v1152 = vmul.f32 %v1086, %v1151
        %v1153 = vld [vmem:[%s4] sm:$0xff]
        %v1154 = vld [vmem:[%s4 + $0x8] sm:$0xff]
        %v1155 = vld [vmem:[%s4 + $0x10] sm:$0xff]
        %v1156 = vld [vmem:[%s4 + $0x18] sm:$0xff]
        %v1157 = vld [vmem:[%s4 + $0x20] sm:$0xff]
        %v1158 = vld [vmem:[%s4 + $0x28] sm:$0xff]
        %v1159 = vld [vmem:[%s4 + $0x30] sm:$0xff]
        %v1160 = vld [vmem:[%s4 + $0x38] sm:$0xff]
        %v1161 = vld [vmem:[%s4 + $0x40] sm:$0xff]
        %v1162 = vld [vmem:[%s4 + $0x48] sm:$0xff]
        %v1163 = vld [vmem:[%s4 + $0x50] sm:$0xff]
        %v1164 = vld [vmem:[%s4 + $0x58] sm:$0xff]
        %v1165 = vld [vmem:[%s4 + $0x60] sm:$0xff]
        %v1166 = vld [vmem:[%s4 + $0x68] sm:$0xff]
        %v1167 = vld [vmem:[%s4 + $0x70] sm:$0xff]
        %v1168 = vld [vmem:[%s4 + $0x78] sm:$0xff]
        %1169 = vmatpush.msra.mxu0 %v1168
        %1170 = vmatpush.msra.mxu0 %v1167
        %1171 = vmatpush.msra.mxu0 %v1166
        %1172 = vmatpush.msra.mxu0 %v1165
        %1173 = vmatpush.msra.mxu0 %v1164
        %1174 = vmatpush.msra.mxu0 %v1163
        %1175 = vmatpush.msra.mxu0 %v1162
        %1176 = vmatpush.msra.mxu0 %v1161
        %1177 = vmatpush.msra.mxu0 %v1160
        %1178 = vmatpush.msra.mxu0 %v1159
        %1179 = vmatpush.msra.mxu0 %v1158
        %1180 = vmatpush.msra.mxu0 %v1157
        %1181 = vmatpush.msra.mxu0 %v1156
        %1182 = vmatpush.msra.mxu0 %v1155
        %1183 = vmatpush.msra.mxu0 %v1154
        %1184 = vmatpush.msra.mxu0 %v1153
        %1185 = vmatmul.f32.gmra.mxu0 %v1152
        %v1186 = vpop.f32.mrf.mxu0
        %v1187 = vadd.f32 0.0, %v1186
        %1188 = vdwg.mxu0
        %v1189 = vadd.f32 %v956, %v1187
        %v1190 = vmul.f32 %v1187, 64.0
        %v1191 = vsub.f32 %v1190, %v957
        %v1192 = vmul.f32 %v1191, %v1191
        %v1193 = vsel %vm1075, %v1192, 0.0
        %1194 = vadd.xlane.f32.xlu0 %v1193
        %v1195 = vpop.xlane.xlu0 %1194
        %v1196 = vsel %vm1075, %v1195, 0.0
        %v1197 = vrot.slane %v1196, 4
        %v1198 = vadd.f32 %v1196, %v1197
        %v1199 = vrot.slane %v1198, 2
        %v1200 = vadd.f32 %v1198, %v1199
        %v1201 = vrot.slane %v1200, 1
        %v1202 = vadd.f32 %v1200, %v1201
        %v1203 = vmul.f32 %v1202, 0.00390625
        %v1204 = vld [vmem:[#allocation7] sm:$0x1]
        %v1205 = vadd.f32 %v1204, %v1203
        %vm1206 = vcmask 0
        %1207 = vst.msk [vmem:[#allocation7] sm:$0x1] %vm1206, %v1205
        %v1208 = vmul.f32 %v957, 0.9
        %v1209 = vmul.f32 %v1190, 0.1
        %v1210 = vadd.f32 %v1208, %v1209
        %1211 = vst [vmem:[#allocation5] sm:$0xf] %v1189
        %1212 = vst [vmem:[#allocation6] sm:$0xf] %v1210
        %v1213 = vld [vmem:[%s10] sm:$0xff]
        %v1214 = vld [vmem:[%s10 + $0x8] sm:$0xff]
        %v1215 = vld [vmem:[%s10 + $0x10] sm:$0xff]
        %v1216 = vld [vmem:[%s10 + $0x18] sm:$0xff]
        %v1218 = vsel %vm962, %v1150, 0
        %1220 = vmatpush.msra.mxu0 0.0
        %1221 = vmatpush.msra.mxu0 0.0
        %1222 = vmatpush.msra.mxu0 0.0
        %1223 = vmatpush.msra.mxu0 0.0
        %1224 = vmatpush.msra.mxu0 0.0
        %1225 = vmatpush.msra.mxu0 0.0
        %1226 = vmatpush.msra.mxu0 0.0
        %1227 = vmatpush.msra.mxu0 0.0
        %1228 = vmatpush.msra.mxu0 0.0
        %1229 = vmatpush.msra.mxu0 0.0
        %1230 = vmatpush.msra.mxu0 0.0
        %1231 = vmatpush.msra.mxu0 0.0
        %1232 = vmatpush.msra.mxu0 %v1216
        %1233 = vmatpush.msra.mxu0 %v1215
        %1234 = vmatpush.msra.mxu0 %v1214
        %1235 = vmatpush.msra.mxu0 %v1213
        %1236 = vmatmul.f32.gmra.mxu0 %v1218
        %v1237 = vpop.f32.mrf.mxu0
        %v1238 = vadd.f32 0.0, %v1237
        %1239 = vdwg.mxu0
        %v1240 = vmul.f32 %v1238, 0.17677669
        %v1241 = vld [vmem:[%s9] sm:$0xf]
        %1243 = vrot.lane.b32.xlu0 %v1238, 96
        %v1244 = vpop.permute.xlu0 %1243
        %v1246 = vsel %vm962, %v1240, 0
        %v1248 = vsel %vm962, %v1244, 0
        %1250 = vmatpush.xpose.msra.mxu0 0.0
        %1251 = vmatpush.xpose.msra.mxu0 0.0
        %1252 = vmatpush.xpose.msra.mxu0 0.0
        %1253 = vmatpush.xpose.msra.mxu0 0.0
        %1254 = vmatpush.xpose.msra.mxu0 0.0
        %1255 = vmatpush.xpose.msra.mxu0 0.0
        %1256 = vmatpush.xpose.msra.mxu0 0.0
        %1257 = vmatpush.xpose.msra.mxu0 0.0
        %1258 = vmatpush.xpose.msra.mxu0 0.0
        %1259 = vmatpush.xpose.msra.mxu0 0.0
        %1260 = vmatpush.xpose.msra.mxu0 0.0
        %1261 = vmatpush.xpose.msra.mxu0 0.0
        %1262 = vmatpush.xpose.msra.mxu0 0.0
        %1263 = vmatpush.xpose.msra.mxu0 0.0
        %1264 = vmatpush.xpose.msra.mxu0 0.0
        %1265 = vmatpush.xpose.msra.mxu0 %v1248
        %1266 = vmatmul.f32.gmra.mxu0 %v1246
        %v1267 = vpop.f32.mrf.mxu0
        %v1268 = vadd.f32 %v1241, %v1267
        %1269 = vdwg.mxu0
        %vm1270 = vcmask 27648
        %v1271 = vsel %vm1270, %v1268, -inf
        %1272 = vmax.xlane.f32.xlu0 %v1271
        %v1273 = vpop.xlane.xlu0 %1272
        %v1274 = vsub.f32 %v1268, %v1273
        %v1275 = vmul.f32 %v1274, 1.442695
        %v1276 = vpow.pop %v1275
        %v1277 = vsel %vm1270, %v1276, 0.0
        %1278 = vadd.xlane.f32.xlu0 %v1277
        %v1279 = vpop.xlane.xlu0 %1278
        %v1280 = vrcp.pop %v1279
        %v1281 = vmul.f32 %v1276, %v1280
        %1282 = vrot.lane.b32.xlu0 %v1238, 64
        %v1283 = vpop.permute.xlu0 %1282
        %vm1284 = vcmask 31744
        %v1286 = vsel %vm1284, %v1281, 0
        %v1288 = vsel %vm1075, %v1283, 0
        %1290 = vmatpush.msra.mxu0 0.0
        %1291 = vmatpush.msra.mxu0 0.0
        %1292 = vmatpush.msra.mxu0 0.0
        %1293 = vmatpush.msra.mxu0 0.0
        %1294 = vmatpush.msra.mxu0 0.0
        %1295 = vmatpush.msra.mxu0 0.0
        %1296 = vmatpush.msra.mxu0 0.0
        %1297 = vmatpush.msra.mxu0 0.0
        %1298 = vmatpush.msra.mxu0 0.0
        %1299 = vmatpush.msra.mxu0 0.0
        %1300 = vmatpush.msra.mxu0 0.0
        %1301 = vmatpush.msra.mxu0 0.0
        %1302 = vmatpush.msra.mxu0 0.0
        %1303 = vmatpush.msra.mxu0 0.0
        %1304 = vmatpush.msra.mxu0 0.0
        %1305 = vmatpush.msra.mxu0 %v1288
        %1306 = vmatmul.f32.gmra.mxu0 %v1286
        %v1307 = vpop.f32.mrf.mxu0
        %v1308 = vadd.f32 0.0, %v1307
        %1309 = vdwg.mxu0
        %v1310 = vld [vmem:[%s11] sm:$0xff]
        %v1311 = vld [vmem:[%s11 + $0x8] sm:$0xff]
        %v1312 = vld [vmem:[%s11 + $0x10] sm:$0xff]
        %v1313 = vld [vmem:[%s11 + $0x18] sm:$0xff]
        %v1315 = vsel %vm962, %v1308, 0
        %1317 = vmatpush.msra.mxu0 0.0
        %1318 = vmatpush.msra.mxu0 0.0
        %1319 = vmatpush.msra.mxu0 0.0
        %1320 = vmatpush.msra.mxu0 0.0
        %1321 = vmatpush.msra.mxu0 0.0
        %1322 = vmatpush.msra.mxu0 0.0
        %1323 = vmatpush.msra.mxu0 0.0
        %1324 = vmatpush.msra.mxu0 0.0
        %1325 = vmatpush.msra.mxu0 0.0
        %1326 = vmatpush.msra.mxu0 0.0
        %1327 = vmatpush.msra.mxu0 0.0
        %1328 = vmatpush.msra.mxu0 0.0
        %1329 = vmatpush.msra.mxu0 %v1313
        %1330 = vmatpush.msra.mxu0 %v1312
        %1331 = vmatpush.msra.mxu0 %v1311
        %1332 = vmatpush.msra.mxu0 %v1310
        %1333 = vmatmul.f32.gmra.mxu0 %v1315
        %v1334 = vpop.f32.mrf.mxu0
        %v1335 = vadd.f32 0.0, %v1334
        %1336 = vdwg.mxu0
        %v1337 = vadd.f32 %v1150, %v1335
        %v1338 = vld [vmem:[%s12] sm:$0xff]
        %v1339 = vld [vmem:[%s12 + $0x8] sm:$0xff]
        %v1340 = vld [vmem:[%s12 + $0x10] sm:$0xff]
        %v1341 = vld [vmem:[%s12 + $0x18] sm:$0xff]
        %v1342 = vld [vmem:[%s13] sm:$0x1]
        %v1344 = vperm.slane %v1342, 0
        %v1347 = vsel %vm962, %v1337, 0
        %1349 = vmatpush.msra.mxu0 0.0
        %1350 = vmatpush.msra.mxu0 0.0
        %1351 = vmatpush.msra.mxu0 0.0
        %1352 = vmatpush.msra.mxu0 0.0
        %1353 = vmatpush.msra.mxu0 0.0
        %1354 = vmatpush.msra.mxu0 0.0
        %1355 = vmatpush.msra.mxu0 0.0
        %1356 = vmatpush.msra.mxu0 0.0
        %1357 = vmatpush.msra.mxu0 0.0
        %1358 = vmatpush.msra.mxu0 0.0
        %1359 = vmatpush.msra.mxu0 0.0
        %1360 = vmatpush.msra.mxu0 0.0
        %1361 = vmatpush.msra.mxu0 %v1341
        %1362 = vmatpush.msra.mxu0 %v1340
        %1363 = vmatpush.msra.mxu0 %v1339
        %1364 = vmatpush.msra.mxu0 %v1338
        %1365 = vmatmul.f32.gmra.mxu0 %v1347
        %v1366 = vpop.f32.mrf.mxu0
        %v1367 = vadd.f32 %v1344, %v1366
        %1368 = vdwg.mxu0
        %v1369 = vmax.f32 %v1367, 0.0
        %v1370 = vld [vmem:[%s14] sm:$0xff]
        %v1371 = vld [vmem:[%s14 + $0x8] sm:$0xff]
        %v1372 = vld [vmem:[%s14 + $0x10] sm:$0xff]
        %v1373 = vld [vmem:[%s14 + $0x18] sm:$0xff]
        %v1374 = vld [vmem:[%s14 + $0x20] sm:$0xff]
        %v1375 = vld [vmem:[%s14 + $0x28] sm:$0xff]
        %v1376 = vld [vmem:[%s14 + $0x30] sm:$0xff]
        %v1377 = vld [vmem:[%s14 + $0x38] sm:$0xff]
        %vm1378 = vcmask 523264
        %v1380 = vsel %vm1378, %v1369, 0
        %1382 = vmatpush.msra.mxu0 0.0
        %1383 = vmatpush.msra.mxu0 0.0
        %1384 = vmatpush.msra.mxu0 0.0
        %1385 = vmatpush.msra.mxu0 0.0
        %1386 = vmatpush.msra.mxu0 0.0
        %1387 = vmatpush.msra.mxu0 0.0
        %1388 = vmatpush.msra.mxu0 0.0
        %1389 = vmatpush.msra.mxu0 0.0
        %1390 = vmatpush.msra.mxu0 %v1377
        %1391 = vmatpush.msra.mxu0 %v1376
        %1392 = vmatpush.msra.mxu0 %v1375
        %1393 = vmatpush.msra.mxu0 %v1374
        %1394 = vmatpush.msra.mxu0 %v1373
        %1395 = vmatpush.msra.mxu0 %v1372
        %1396 = vmatpush.msra.mxu0 %v1371
        %1397 = vmatpush.msra.mxu0 %v1370
        %1398 = vmatmul.f32.gmra.mxu0 %v1380
        %v1399 = vpop.f32.mrf.mxu0
        %v1400 = vadd.f32 0.0, %v1399
        %1401 = vdwg.mxu0
        %v1402 = vadd.f32 %v1337, %v1400
        %v1403 = vld [vmem:[%s15] sm:$0x1]
        %v1405 = vperm.slane %v1403, 0
        %v1407 = vadd.f32 %v1402, %v1405
        %vm1408 = vcmask 257024
        %1409 = vst.msk [vmem:[#allocation4] sm:$0xf] %vm1408, %v1407
        %p1410 = scmp.eq.s32.totalorder %s36, 1
        // Predicated region
        $region101: #{_lambda_.1} parent=95 // pred_check
          %p1411 = pneg %p1410
        $region102: #{_lambda_.1} parent=95 // pred_check_branch
          %1413 = sbr.rel (%p1411) target = $region104
        $region103: #{_lambda_.1} parent=95 // pred_region
          %v1414 = vld [vmem:[#allocation4] sm:$0xf]
          %1415 = vst.msk [vmem:[#allocation8] sm:$0xf] %vm1408, %v1414
          %v1416 = vld [vmem:[#allocation5] sm:$0xf]
          %1417 = vst [vmem:[%s20] sm:$0xf] %v1416
          %v1418 = vld [vmem:[#allocation6] sm:$0xf]
          %1419 = vst [vmem:[%s21] sm:$0xf] %v1418
          %v1420 = vld [vmem:[#allocation7] sm:$0x1]
          %v1421 = vmul.f32 %v1420, 0.5
          %1422 = vst.msk [vmem:[#allocation10] sm:$0x1] %vm1206, %v1421
        $region104: #{_lambda_.1} parent=95 // pred_fallthru
          _
        // Predicated region
        $region105: #{_lambda_.1} parent=95 // pred_check
          %p1423 = pneg %p448
        $region106: #{_lambda_.1} parent=95 // pred_check_branch
          %1425 = sbr.rel (%p1423) target = $region108
        $region107: #{_lambda_.1} parent=95 // pred_region
          %1427 = vsyncadd [#allocation9], 0
          %s1429 = sshll.u32 [#allocation8], 4
          %s1430 = int_to_ptr.vmem [resolvable:$true] %s1429
          %s1431 = sshll.u32 %s19, 4
          %s1432 = int_to_ptr.hbm [resolvable:$true] %s1431
          %1434 = dma.vmem_to_hbm [thread:$0]  %s1430, 64, %s1432, [#allocation9]
        $region108: #{_lambda_.1} parent=95 // pred_fallthru
          _
        // Predicated region
        $region109: #{_lambda_.1} parent=95 // pred_check
          %p1435 = pneg %p469
        $region110: #{_lambda_.1} parent=95 // pred_check_branch
          %1437 = sbr.rel (%p1435) target = $region112
        $region111: #{_lambda_.1} parent=95 // pred_region
          _
        $region112: #{_lambda_.1} parent=95 // pred_fallthru
          _
        // Predicated region
        $region113: #{_lambda_.1} parent=95 // pred_check
          %p1438 = pneg %p490
        $region114: #{_lambda_.1} parent=95 // pred_check_branch
          %1440 = sbr.rel (%p1438) target = $region116
        $region115: #{_lambda_.1} parent=95 // pred_region
          _
        $region116: #{_lambda_.1} parent=95 // pred_fallthru
          _
        // Predicated region
        $region117: #{_lambda_.1} parent=95 // pred_check
          %p1441 = pneg %p511
        $region118: #{_lambda_.1} parent=95 // pred_check_branch
          %1443 = sbr.rel (%p1441) target = $region120
        $region119: #{_lambda_.1} parent=95 // pred_region
          %1445 = vsyncadd [#allocation11], 0
          %s1447 = sshll.u32 [#allocation10], 4
          %s1448 = int_to_ptr.vmem [resolvable:$true] %s1447
          %s1449 = sshll.u32 %s22, 4
          %s1450 = int_to_ptr.hbm [resolvable:$true] %s1449
          %1452 = dma.vmem_to_hbm [thread:$0]  %s1448, 16, %s1450, [#allocation11]
        $region120: #{_lambda_.1} parent=95 // pred_fallthru
          _
        // Predicated region
        $region121: #{_lambda_.1} parent=95 // pred_check
          %p1453 = pneg %p448
        $region122: #{_lambda_.1} parent=95 // pred_check_branch
          %1455 = sbr.rel (%p1453) target = $region124
        $region123: #{_lambda_.1} parent=95 // pred_region
          %1457 = dma.done [#allocation9], 64
        $region124: #{_lambda_.1} parent=95 // pred_fallthru
          _
        // Predicated region
        $region125: #{_lambda_.1} parent=95 // pred_check
          %p1458 = pneg %p469
        $region126: #{_lambda_.1} parent=95 // pred_check_branch
          %1460 = sbr.rel (%p1458) target = $region128
        $region127: #{_lambda_.1} parent=95 // pred_region
          _
        $region128: #{_lambda_.1} parent=95 // pred_fallthru
          _
        // Predicated region
        $region129: #{_lambda_.1} parent=95 // pred_check
          %p1461 = pneg %p490
        $region130: #{_lambda_.1} parent=95 // pred_check_branch
          %1463 = sbr.rel (%p1461) target = $region132
        $region131: #{_lambda_.1} parent=95 // pred_region
          _
        $region132: #{_lambda_.1} parent=95 // pred_fallthru
          _
        // Predicated region
        $region133: #{_lambda_.1} parent=95 // pred_check
          %p1464 = pneg %p511
        $region134: #{_lambda_.1} parent=95 // pred_check_branch
          %1466 = sbr.rel (%p1464) target = $region136
        $region135: #{_lambda_.1} parent=95 // pred_region
          %1468 = dma.done [#allocation11], 16
        $region136: #{_lambda_.1} parent=95 // pred_fallthru
          _
      $region96: #{_lambda_.1} parent=5 // pred_fallthru
        _
      %p1469 = scmp.le.s32.totalorder 2, %s31
      // Predicated region
      $region137: #{_lambda_.1} parent=5 // pred_check
        %p1470 = pneg %p1469
      $region138: #{_lambda_.1} parent=5 // pred_check_branch
        %1472 = sbr.rel (%p1470) target = $region140
      $region139: #{_lambda_.1} parent=5 // pred_region
        %s1473 = ssub.s32 %s31, 2
      $region140: #{_lambda_.1} parent=5 // pred_fallthru
        _
    $region6: #{_lambda_.1} parent=1 // loop_footer
      %s35 = sadd.s32 1, %s31
    $region7: #{_lambda_.1} parent=1 // loop_footer_branch
      %30 = sbr.rel target = $region3
    $region8: #{_lambda_.1} parent=1 // loop_exit
      _
    %1474 = vsyncpa [#allocation9], 1
    %s1475 = scalar_lea.sflag [#allocation9], 1
    %1476 = vsyncpa %s1475, 1
    %1477 = vsyncpa [#allocation11], 1

</llo_original>
